<compile_context>
chip_gen: v5e
topology: v5e:2x2
jax: 0.10.0
libtpu: 0.0.40
codegen_flags: <defaults>
</compile_context>

<pallas_src>
import functools
import math

import jax
import jax.numpy as jnp
import numpy as np
from jax import lax
from jax.experimental import pallas as pl
from jax.experimental.pallas import tpu as pltpu


# ----------------------------------------------------------------------------
# Config (small, deterministic)
# ----------------------------------------------------------------------------
VOCAB = 64
D_MODEL = 32
N_HEADS = 4
D_KV = 8
INNER = N_HEADS * D_KV          # 32
D_FF = 64
N_LAYERS = 2
NUM_BUCKETS = 32
MAX_DISTANCE = 128
LN_EPS = 1e-6
NEG = -1e9                      # finite "minus infinity" (avoids NaN in softmax)

B = 2
S = 8


# ----------------------------------------------------------------------------
# Glue (plain JAX): relative-position bias, padding mask
# ----------------------------------------------------------------------------
def _relative_position_bucket(rel_pos, bidirectional=True, num_buckets=32,
                              max_distance=128):
    relative_buckets = jnp.zeros_like(rel_pos)
    if bidirectional:
        num_buckets //= 2
        relative_buckets = relative_buckets + (rel_pos > 0).astype(jnp.int32) * num_buckets
        rel_pos = jnp.abs(rel_pos)
    else:
        rel_pos = -jnp.minimum(rel_pos, 0)
    max_exact = num_buckets // 2
    is_small = rel_pos < max_exact
    safe = jnp.maximum(rel_pos, 1)          # avoid log(0); masked by is_small below
    rel_if_large = max_exact + (
        jnp.log(safe.astype(jnp.float32) / max_exact)
        / math.log(max_distance / max_exact)
        * (num_buckets - max_exact)
    ).astype(jnp.int32)
    rel_if_large = jnp.minimum(rel_if_large, num_buckets - 1)
    return relative_buckets + jnp.where(is_small, rel_pos, rel_if_large)


def compute_relative_position_bias(q_len, k_len, bidirectional, bias_table):
    # bias_table: (num_buckets, n_heads)
    ctx = jnp.arange(q_len, dtype=jnp.int32)[:, None]
    mem = jnp.arange(k_len, dtype=jnp.int32)[None, :]
    rel = mem - ctx
    buckets = _relative_position_bucket(rel, bidirectional, NUM_BUCKETS, MAX_DISTANCE)
    values = bias_table[buckets]                        # (q, k, H)
    return jnp.transpose(values, (2, 0, 1))[None]       # (1, H, q, k)


def get_encoder_attention_mask(input_ids):
    pad = (input_ids == 0)                               # (B, S)
    Bb, Ss = input_ids.shape
    m = jnp.broadcast_to(pad[:, None, None, :], (Bb, 1, Ss, Ss))
    return jnp.where(m, NEG, 0.0).astype(jnp.float32)    # (B,1,S,S)


def build_attention_bias(input_ids, bias_table):
    """Per-batch additive attention bias (B, H, S, S) = pos bias + pad mask.
    Note: repeated per-layer mask addition in the PyTorch module is idempotent
    with -inf masks, so a single constant bias per layer is equivalent."""
    Bb, Ss = input_ids.shape
    pos = compute_relative_position_bias(Ss, Ss, True, bias_table)   # (1,H,S,S)
    mask = get_encoder_attention_mask(input_ids)                     # (B,1,S,S)
    return (pos + mask).astype(jnp.float32)                          # (B,H,S,S)


# ----------------------------------------------------------------------------
# Fused Pallas kernel: all layers + final RMS-norm for ONE batch element
# ----------------------------------------------------------------------------
def t5_stack_kernel(h_ref, bias_ref, ln1_ref, wqkv_ref, wo_ref, ln2_ref,
                    wi01_ref, wof_ref, fln_ref, out_ref,
                    *, n_layers, n_heads, d_kv, d_ff, eps):
    x = h_ref[0]            # (S, D) f32 residual stream, resident for all layers
    bias = bias_ref[0]      # (H, S, S) f32 additive bias (pos bias + pad mask)
    inner = n_heads * d_kv

    def rms(v, w_row):      # T5LayerNorm: RMS norm (no mean subtraction), f32
        var = jnp.mean(v * v, axis=-1, keepdims=True)
        return v * jax.lax.rsqrt(var + eps) * w_row

    c = math.sqrt(2.0 / math.pi)             # gelu_new constant

    for l in range(n_layers):                # unrolled at trace time
        # ---------------- self-attention ----------------
        xn = rms(x, ln1_ref[l])                                        # (S,D) f32
        # one lane-dense fused QKV matmul: (S, D) @ (D, 3*inner)
        qkv = jnp.dot(xn.astype(jnp.bfloat16), wqkv_ref[l],
                      preferred_element_type=jnp.float32).astype(jnp.bfloat16)

        ctx_heads = []
        for h in range(n_heads):             # per-head score/ctx (intrinsically per-head)
            qh = qkv[:, h * d_kv:(h + 1) * d_kv]                       # (S,dk) bf16
            kh = qkv[:, inner + h * d_kv:inner + (h + 1) * d_kv]
            vh = qkv[:, 2 * inner + h * d_kv:2 * inner + (h + 1) * d_kv]
            # scores = q @ k^T (no 1/sqrt(d_kv) scaling, T5 convention) + bias
            s = lax.dot_general(qh, kh, (((1,), (1,)), ((), ())),
                                preferred_element_type=jnp.float32) + bias[h]
            s = s - jnp.max(s, axis=-1, keepdims=True)
            e = jnp.exp(s)                                             # f32 (v5e-safe)
            inv = pl.reciprocal(jnp.sum(e, axis=-1, keepdims=True), approx=True)
            p = (e * inv).astype(jnp.bfloat16)                         # (S,S)
            ctx_heads.append(jnp.dot(p, vh, preferred_element_type=jnp.float32))

        # head-concat -> single lane-dense output projection
        ctx = jnp.concatenate(ctx_heads, axis=-1).astype(jnp.bfloat16)  # (S, inner)
        x = x + jnp.dot(ctx, wo_ref[l], preferred_element_type=jnp.float32)

        # ---------------- gated-GELU feed-forward ----------------
        xn2 = rms(x, ln2_ref[l]).astype(jnp.bfloat16)
        # fused [wi0 | wi1]: one (S, D) @ (D, 2*d_ff) matmul, 128-lane dense
        up = jnp.dot(xn2, wi01_ref[l], preferred_element_type=jnp.float32)
        g = up[:, :d_ff]
        lin = up[:, d_ff:]
        g = 0.5 * g * (1.0 + jnp.tanh(c * g * (1.0 + 0.044715 * g * g)))  # gelu_new
        x = x + jnp.dot((g * lin).astype(jnp.bfloat16), wof_ref[l],
                        preferred_element_type=jnp.float32)

    out_ref[0] = rms(x, fln_ref[...])        # final T5LayerNorm, f32 output


# ----------------------------------------------------------------------------
# Wrapper: embedding lookup, bias construction, weight packing, one pallas_call
# ----------------------------------------------------------------------------
@jax.jit
def t5_stack_forward(input_ids, params):
    Bb, Ss = input_ids.shape
    hidden = params["embed"][input_ids].astype(jnp.float32)            # (B,S,D)
    bias = build_attention_bias(input_ids, params["rel_bias"])         # (B,H,S,S)

    layers = params["layers"]
    L = len(layers)

    def stack(name):
        return jnp.stack([lp[name] for lp in layers])

    ln1 = stack("ln1")                                                 # (L,1,D) f32
    ln2 = stack("ln2")                                                 # (L,1,D) f32
    # lane-dense, contiguous weight layouts; pre-cast to bf16 (MXU inputs)
    wqkv = jnp.concatenate([stack("wq"), stack("wk"), stack("wv")],
                           axis=-1).astype(jnp.bfloat16)               # (L,D,3*inner)
    wo = stack("wo").astype(jnp.bfloat16)                              # (L,inner,D)
    wi01 = jnp.concatenate([stack("wi0"), stack("wi1")],
                           axis=-1).astype(jnp.bfloat16)               # (L,D,2*F)
    wof = stack("wof").astype(jnp.bfloat16)                            # (L,F,D)
    fln = params["final_ln"]                                           # (1,D) f32

    kernel = functools.partial(t5_stack_kernel, n_layers=L, n_heads=N_HEADS,
                               d_kv=D_KV, d_ff=D_FF, eps=LN_EPS)

    grid_spec = pltpu.PrefetchScalarGridSpec(
        num_scalar_prefetch=0,
        grid=(Bb,),                                                    # per-batch grid
        in_specs=[
            pl.BlockSpec((1, Ss, D_MODEL), lambda b: (b, 0, 0)),        # hidden
            pl.BlockSpec((1, N_HEADS, Ss, Ss), lambda b: (b, 0, 0, 0)), # bias
            pl.BlockSpec((L, 1, D_MODEL), lambda b: (0, 0, 0)),         # ln1
            pl.BlockSpec((L, D_MODEL, 3 * INNER), lambda b: (0, 0, 0)), # wqkv
            pl.BlockSpec((L, INNER, D_MODEL), lambda b: (0, 0, 0)),     # wo
            pl.BlockSpec((L, 1, D_MODEL), lambda b: (0, 0, 0)),         # ln2
            pl.BlockSpec((L, D_MODEL, 2 * D_FF), lambda b: (0, 0, 0)),  # wi0|wi1
            pl.BlockSpec((L, D_FF, D_MODEL), lambda b: (0, 0, 0)),      # wof
            pl.BlockSpec((1, D_MODEL), lambda b: (0, 0)),               # final ln
        ],
        out_specs=pl.BlockSpec((1, Ss, D_MODEL), lambda b: (b, 0, 0)),
    )

    # advisory cost hint for XLA scheduling around the fused custom call
    flops_per_b_layer = (
        2 * Ss * D_MODEL * 3 * INNER              # fused QKV projection
        + N_HEADS * 2 * (2 * Ss * Ss * D_KV)      # scores + ctx
        + 2 * Ss * INNER * D_MODEL                # output projection
        + 2 * Ss * D_MODEL * 2 * D_FF             # FFN up (fused gate|linear)
        + 2 * Ss * D_FF * D_MODEL                 # FFN down
    )
    bytes_accessed = (hidden.size * 4 + bias.size * 4 + ln1.size * 4 + ln2.size * 4
                      + wqkv.size * 2 + wo.size * 2 + wi01.size * 2 + wof.size * 2
                      + fln.size * 4 + Bb * Ss * D_MODEL * 4)
    cost = pl.CostEstimate(
        flops=Bb * L * flops_per_b_layer,
        transcendentals=Bb * L * (N_HEADS * Ss * Ss + Ss * D_FF),
        bytes_accessed=bytes_accessed,
    )

    out = pl.pallas_call(
        kernel,
        out_shape=jax.ShapeDtypeStruct((Bb, Ss, D_MODEL), jnp.float32),
        grid_spec=grid_spec,
        compiler_params=pltpu.CompilerParams(
            dimension_semantics=("parallel",),        # batch axis: megacore on v7x
            vmem_limit_bytes=32 * 1024 * 1024,
        ),
        cost_estimate=cost,
    )(hidden, bias, ln1, wqkv, wo, ln2, wi01, wof, fln)
    return out                                                          # (B,S,D)


# ----------------------------------------------------------------------------
# Pure-JAX reference (mirrors the PyTorch forward semantics, f32 throughout)
# ----------------------------------------------------------------------------
def ref_forward(input_ids, params):
    hidden = params["embed"][input_ids].astype(jnp.float32)
    mask = get_encoder_attention_mask(input_ids)
    pos_bias = compute_relative_position_bias(S, S, True, params["rel_bias"])
    bias = pos_bias + mask                                              # (B,H,S,S)

    def rms_ln(x, w):
        var = jnp.mean(x * x, axis=-1, keepdims=True)
        return x * jax.lax.rsqrt(var + LN_EPS) * w[0]

    def gelu_new(x):
        c = math.sqrt(2.0 / math.pi)
        return 0.5 * x * (1.0 + jnp.tanh(c * (x + 0.044715 * x ** 3)))

    for lp in params["layers"]:
        xn = rms_ln(hidden, lp["ln1"])
        q = xn @ lp["wq"]
        k = xn @ lp["wk"]
        v = xn @ lp["wv"]
        q = q.reshape(B, S, N_HEADS, D_KV).transpose(0, 2, 1, 3)
        k = k.reshape(B, S, N_HEADS, D_KV).transpose(0, 2, 1, 3)
        v = v.reshape(B, S, N_HEADS, D_KV).transpose(0, 2, 1, 3)
        sc = jnp.einsum("bhqd,bhkd->bhqk", q, k) + bias
        sc = sc - jnp.max(sc, axis=-1, keepdims=True)
        e = jnp.exp(sc)
        p = e / jnp.sum(e, axis=-1, keepdims=True)
        ctx = jnp.einsum("bhqk,bhkd->bhqd", p, v)
        ctx = ctx.transpose(0, 2, 1, 3).reshape(B, S, N_HEADS * D_KV)
        hidden = hidden + ctx @ lp["wo"]
        xn2 = rms_ln(hidden, lp["ln2"])
        ff = (gelu_new(xn2 @ lp["wi0"]) * (xn2 @ lp["wi1"])) @ lp["wof"]
        hidden = hidden + ff
    return rms_ln(hidden, params["final_ln"])


# ----------------------------------------------------------------------------
# Deterministic parameter init
# ----------------------------------------------------------------------------
def init_params(key):
    HD = N_HEADS * D_KV
    keys = jax.random.split(key, 2 + N_LAYERS * 7)
    params = {
        "embed": 0.02 * jax.random.normal(keys[0], (VOCAB, D_MODEL), jnp.float32),
        "rel_bias": 0.1 * jax.random.normal(keys[1], (NUM_BUCKETS, N_HEADS), jnp.float32),
        "final_ln": jnp.ones((1, D_MODEL), jnp.float32),
        "layers": [],
    }
    ki = 2
    for _ in range(N_LAYERS):
        lp = {
            "ln1": jnp.ones((1, D_MODEL), jnp.float32),
            "ln2": jnp.ones((1, D_MODEL), jnp.float32),
            "wq": 0.05 * jax.random.normal(keys[ki + 0], (D_MODEL, HD), jnp.float32),
            "wk": 0.05 * jax.random.normal(keys[ki + 1], (D_MODEL, HD), jnp.float32),
            "wv": 0.05 * jax.random.normal(keys[ki + 2], (D_MODEL, HD), jnp.float32),
            "wo": 0.05 * jax.random.normal(keys[ki + 3], (HD, D_MODEL), jnp.float32),
            "wi0": 0.05 * jax.random.normal(keys[ki + 4], (D_MODEL, D_FF), jnp.float32),
            "wi1": 0.05 * jax.random.normal(keys[ki + 5], (D_MODEL, D_FF), jnp.float32),
            "wof": 0.05 * jax.random.normal(keys[ki + 6], (D_FF, D_MODEL), jnp.float32),
        }
        params["layers"].append(lp)
        ki += 7
    return params


# ----------------------------------------------------------------------------
if __name__ == "__main__":
    key = jax.random.PRNGKey(0)
    kp, kid = jax.random.split(key)
    params = init_params(kp)

    input_ids = jax.random.randint(kid, (B, S), minval=1, maxval=VOCAB, dtype=jnp.int32)
    # introduce some padding tokens (id 0) to exercise the encoder attention mask
    input_ids = input_ids.at[1, -2:].set(0)

    out = jax.block_until_ready(t5_stack_forward(input_ids, params))
    ref = jax.block_until_ready(ref_forward(input_ids, params))
    np.testing.assert_allclose(np.asarray(out), np.asarray(ref), rtol=2e-2, atol=2e-2)

    print("KERNEL_OK")
</pallas_src>

<mosaic_0001>
module attributes {stable_mosaic.version = 11 : i64} {
  func.func @t5_stack_kernel(%arg0: i32, %arg1: memref<1x8x32xf32, #tpu.memory_space<vmem>>, %arg2: memref<1x4x8x8xf32, #tpu.memory_space<vmem>>, %arg3: memref<2x1x32xf32, #tpu.memory_space<vmem>>, %arg4: memref<2x32x96xbf16, #tpu.memory_space<vmem>>, %arg5: memref<2x32x32xbf16, #tpu.memory_space<vmem>>, %arg6: memref<2x1x32xf32, #tpu.memory_space<vmem>>, %arg7: memref<2x32x128xbf16, #tpu.memory_space<vmem>>, %arg8: memref<2x64x32xbf16, #tpu.memory_space<vmem>>, %arg9: memref<1x32xf32, #tpu.memory_space<vmem>>, %arg10: memref<1x8x32xf32, #tpu.memory_space<vmem>>) attributes {dimension_semantics = [#tpu.dimension_semantics<parallel>], iteration_bounds = array<i64: 2>, scalar_prefetch = 0 : i64, scratch_operands = 0 : i64, tpu.core_type = #tpu.core_type<tc>, window_params = [{transform_indices = @transform_0, window_bounds = array<i64: 1, 8, 32>}, {transform_indices = @transform_1, window_bounds = array<i64: 1, 4, 8, 8>}, {pipeline_mode = #tpu.pipeline_mode<synchronous>, transform_indices = @transform_2, window_bounds = array<i64: 2, 1, 32>}, {pipeline_mode = #tpu.pipeline_mode<synchronous>, transform_indices = @transform_3, window_bounds = array<i64: 2, 32, 96>}, {pipeline_mode = #tpu.pipeline_mode<synchronous>, transform_indices = @transform_4, window_bounds = array<i64: 2, 32, 32>}, {pipeline_mode = #tpu.pipeline_mode<synchronous>, transform_indices = @transform_5, window_bounds = array<i64: 2, 1, 32>}, {pipeline_mode = #tpu.pipeline_mode<synchronous>, transform_indices = @transform_6, window_bounds = array<i64: 2, 32, 128>}, {pipeline_mode = #tpu.pipeline_mode<synchronous>, transform_indices = @transform_7, window_bounds = array<i64: 2, 64, 32>}, {pipeline_mode = #tpu.pipeline_mode<synchronous>, transform_indices = @transform_8, window_bounds = array<i64: 1, 32>}, {transform_indices = @transform_9, window_bounds = array<i64: 1, 8, 32>}]} {
    %c0 = arith.constant 0 : index
    %c0_0 = arith.constant 0 : index
    %c0_1 = arith.constant 0 : index
    %0 = vector.load %arg1[%c0, %c0_0, %c0_1] : memref<1x8x32xf32, #tpu.memory_space<vmem>>, vector<1x8x32xf32>
    %1 = vector.shape_cast %0 : vector<1x8x32xf32> to vector<8x32xf32>
    %c0_2 = arith.constant 0 : index
    %c0_3 = arith.constant 0 : index
    %c0_4 = arith.constant 0 : index
    %c0_5 = arith.constant 0 : index
    %2 = vector.load %arg2[%c0_2, %c0_3, %c0_4, %c0_5] : memref<1x4x8x8xf32, #tpu.memory_space<vmem>>, vector<1x4x8x8xf32>
    %3 = vector.shape_cast %2 : vector<1x4x8x8xf32> to vector<4x8x8xf32>
    %c0_6 = arith.constant 0 : index
    %c0_7 = arith.constant 0 : index
    %c0_8 = arith.constant 0 : index
    %4 = vector.load %arg3[%c0_6, %c0_7, %c0_8] : memref<2x1x32xf32, #tpu.memory_space<vmem>>, vector<1x1x32xf32>
    %5 = vector.shape_cast %4 : vector<1x1x32xf32> to vector<1x32xf32>
    %6 = arith.mulf %1, %1 : vector<8x32xf32>
    %cst = arith.constant dense<0.000000e+00> : vector<8xf32>
    %7 = vector.multi_reduction <add>, %6, %cst [1] : vector<8x32xf32> to vector<8xf32>
    %8 = vector.shape_cast %7 : vector<8xf32> to vector<8x1xf32>
    %cst_9 = arith.constant 3.200000e+01 : f32
    %9 = vector.broadcast %cst_9 : f32 to vector<8x1xf32>
    %10 = arith.divf %8, %9 : vector<8x1xf32>
    %cst_10 = arith.constant 9.99999997E-7 : f32
    %11 = vector.broadcast %cst_10 : f32 to vector<8x1xf32>
    %12 = arith.addf %10, %11 : vector<8x1xf32>
    %13 = math.rsqrt %12 : vector<8x1xf32>
    %14 = vector.broadcast %13 : vector<8x1xf32> to vector<8x32xf32>
    %15 = arith.mulf %1, %14 : vector<8x32xf32>
    %16 = vector.broadcast %5 : vector<1x32xf32> to vector<8x32xf32>
    %17 = arith.mulf %15, %16 : vector<8x32xf32>
    %18 = arith.truncf %17 : vector<8x32xf32> to vector<8x32xbf16>
    %c0_11 = arith.constant 0 : index
    %c0_12 = arith.constant 0 : index
    %c0_13 = arith.constant 0 : index
    %19 = vector.load %arg4[%c0_11, %c0_12, %c0_13] : memref<2x32x96xbf16, #tpu.memory_space<vmem>>, vector<1x32x96xbf16>
    %20 = vector.shape_cast %19 : vector<1x32x96xbf16> to vector<32x96xbf16>
    %cst_14 = arith.constant dense<0.000000e+00> : vector<8x96xf32>
    %21 = tpu.matmul %18, %20, %cst_14 {dimension_numbers = #tpu.dot_dimension_numbers<[1], [0], [0], [1], [0, 0, 1, 1], [], []>} : vector<8x32xbf16>, vector<32x96xbf16>, vector<8x96xf32> -> vector<8x96xf32>
    %22 = arith.truncf %21 : vector<8x96xf32> to vector<8x96xbf16>
    %23 = vector.extract_strided_slice %22 {offsets = [0, 0], sizes = [8, 8], strides = [1, 1]} : vector<8x96xbf16> to vector<8x8xbf16>
    %24 = vector.extract_strided_slice %22 {offsets = [0, 32], sizes = [8, 8], strides = [1, 1]} : vector<8x96xbf16> to vector<8x8xbf16>
    %25 = vector.extract_strided_slice %22 {offsets = [0, 64], sizes = [8, 8], strides = [1, 1]} : vector<8x96xbf16> to vector<8x8xbf16>
    %cst_15 = arith.constant dense<0.000000e+00> : vector<8x8xf32>
    %26 = tpu.matmul %23, %24, %cst_15 {dimension_numbers = #tpu.dot_dimension_numbers<[1], [1], [0], [0], [0, 0, 1, 0], [], []>} : vector<8x8xbf16>, vector<8x8xbf16>, vector<8x8xf32> -> vector<8x8xf32>
    %27 = vector.extract_strided_slice %3 {offsets = [0, 0, 0], sizes = [1, 8, 8], strides = [1, 1, 1]} : vector<4x8x8xf32> to vector<1x8x8xf32>
    %28 = vector.shape_cast %27 : vector<1x8x8xf32> to vector<8x8xf32>
    %29 = arith.addf %26, %28 : vector<8x8xf32>
    %cst_16 = arith.constant dense<0xFF800000> : vector<8xf32>
    %30 = vector.multi_reduction <maximumf>, %29, %cst_16 [1] : vector<8x8xf32> to vector<8xf32>
    %31 = vector.shape_cast %30 : vector<8xf32> to vector<8x1xf32>
    %32 = vector.broadcast %31 : vector<8x1xf32> to vector<8x8xf32>
    %33 = arith.subf %29, %32 : vector<8x8xf32>
    %34 = math.exp %33 : vector<8x8xf32>
    %cst_17 = arith.constant dense<0.000000e+00> : vector<8xf32>
    %35 = vector.multi_reduction <add>, %34, %cst_17 [1] : vector<8x8xf32> to vector<8xf32>
    %36 = vector.shape_cast %35 : vector<8xf32> to vector<8x1xf32>
    %37 = tpu.reciprocal %36 {approx = true} : vector<8x1xf32> -> vector<8x1xf32>
    %38 = vector.broadcast %37 : vector<8x1xf32> to vector<8x8xf32>
    %39 = arith.mulf %34, %38 : vector<8x8xf32>
    %40 = arith.truncf %39 : vector<8x8xf32> to vector<8x8xbf16>
    %cst_18 = arith.constant dense<0.000000e+00> : vector<8x8xf32>
    %41 = tpu.matmul %40, %25, %cst_18 {dimension_numbers = #tpu.dot_dimension_numbers<[1], [0], [0], [1], [0, 0, 1, 1], [], []>} : vector<8x8xbf16>, vector<8x8xbf16>, vector<8x8xf32> -> vector<8x8xf32>
    %42 = vector.extract_strided_slice %22 {offsets = [0, 8], sizes = [8, 8], strides = [1, 1]} : vector<8x96xbf16> to vector<8x8xbf16>
    %43 = vector.extract_strided_slice %22 {offsets = [0, 40], sizes = [8, 8], strides = [1, 1]} : vector<8x96xbf16> to vector<8x8xbf16>
    %44 = vector.extract_strided_slice %22 {offsets = [0, 72], sizes = [8, 8], strides = [1, 1]} : vector<8x96xbf16> to vector<8x8xbf16>
    %cst_19 = arith.constant dense<0.000000e+00> : vector<8x8xf32>
    %45 = tpu.matmul %42, %43, %cst_19 {dimension_numbers = #tpu.dot_dimension_numbers<[1], [1], [0], [0], [0, 0, 1, 0], [], []>} : vector<8x8xbf16>, vector<8x8xbf16>, vector<8x8xf32> -> vector<8x8xf32>
    %46 = vector.extract_strided_slice %3 {offsets = [1, 0, 0], sizes = [1, 8, 8], strides = [1, 1, 1]} : vector<4x8x8xf32> to vector<1x8x8xf32>
    %47 = vector.shape_cast %46 : vector<1x8x8xf32> to vector<8x8xf32>
    %48 = arith.addf %45, %47 : vector<8x8xf32>
    %cst_20 = arith.constant dense<0xFF800000> : vector<8xf32>
    %49 = vector.multi_reduction <maximumf>, %48, %cst_20 [1] : vector<8x8xf32> to vector<8xf32>
    %50 = vector.shape_cast %49 : vector<8xf32> to vector<8x1xf32>
    %51 = vector.broadcast %50 : vector<8x1xf32> to vector<8x8xf32>
    %52 = arith.subf %48, %51 : vector<8x8xf32>
    %53 = math.exp %52 : vector<8x8xf32>
    %cst_21 = arith.constant dense<0.000000e+00> : vector<8xf32>
    %54 = vector.multi_reduction <add>, %53, %cst_21 [1] : vector<8x8xf32> to vector<8xf32>
    %55 = vector.shape_cast %54 : vector<8xf32> to vector<8x1xf32>
    %56 = tpu.reciprocal %55 {approx = true} : vector<8x1xf32> -> vector<8x1xf32>
    %57 = vector.broadcast %56 : vector<8x1xf32> to vector<8x8xf32>
    %58 = arith.mulf %53, %57 : vector<8x8xf32>
    %59 = arith.truncf %58 : vector<8x8xf32> to vector<8x8xbf16>
    %cst_22 = arith.constant dense<0.000000e+00> : vector<8x8xf32>
    %60 = tpu.matmul %59, %44, %cst_22 {dimension_numbers = #tpu.dot_dimension_numbers<[1], [0], [0], [1], [0, 0, 1, 1], [], []>} : vector<8x8xbf16>, vector<8x8xbf16>, vector<8x8xf32> -> vector<8x8xf32>
    %61 = vector.extract_strided_slice %22 {offsets = [0, 16], sizes = [8, 8], strides = [1, 1]} : vector<8x96xbf16> to vector<8x8xbf16>
    %62 = vector.extract_strided_slice %22 {offsets = [0, 48], sizes = [8, 8], strides = [1, 1]} : vector<8x96xbf16> to vector<8x8xbf16>
    %63 = vector.extract_strided_slice %22 {offsets = [0, 80], sizes = [8, 8], strides = [1, 1]} : vector<8x96xbf16> to vector<8x8xbf16>
    %cst_23 = arith.constant dense<0.000000e+00> : vector<8x8xf32>
    %64 = tpu.matmul %61, %62, %cst_23 {dimension_numbers = #tpu.dot_dimension_numbers<[1], [1], [0], [0], [0, 0, 1, 0], [], []>} : vector<8x8xbf16>, vector<8x8xbf16>, vector<8x8xf32> -> vector<8x8xf32>
    %65 = vector.extract_strided_slice %3 {offsets = [2, 0, 0], sizes = [1, 8, 8], strides = [1, 1, 1]} : vector<4x8x8xf32> to vector<1x8x8xf32>
    %66 = vector.shape_cast %65 : vector<1x8x8xf32> to vector<8x8xf32>
    %67 = arith.addf %64, %66 : vector<8x8xf32>
    %cst_24 = arith.constant dense<0xFF800000> : vector<8xf32>
    %68 = vector.multi_reduction <maximumf>, %67, %cst_24 [1] : vector<8x8xf32> to vector<8xf32>
    %69 = vector.shape_cast %68 : vector<8xf32> to vector<8x1xf32>
    %70 = vector.broadcast %69 : vector<8x1xf32> to vector<8x8xf32>
    %71 = arith.subf %67, %70 : vector<8x8xf32>
    %72 = math.exp %71 : vector<8x8xf32>
    %cst_25 = arith.constant dense<0.000000e+00> : vector<8xf32>
    %73 = vector.multi_reduction <add>, %72, %cst_25 [1] : vector<8x8xf32> to vector<8xf32>
    %74 = vector.shape_cast %73 : vector<8xf32> to vector<8x1xf32>
    %75 = tpu.reciprocal %74 {approx = true} : vector<8x1xf32> -> vector<8x1xf32>
    %76 = vector.broadcast %75 : vector<8x1xf32> to vector<8x8xf32>
    %77 = arith.mulf %72, %76 : vector<8x8xf32>
    %78 = arith.truncf %77 : vector<8x8xf32> to vector<8x8xbf16>
    %cst_26 = arith.constant dense<0.000000e+00> : vector<8x8xf32>
    %79 = tpu.matmul %78, %63, %cst_26 {dimension_numbers = #tpu.dot_dimension_numbers<[1], [0], [0], [1], [0, 0, 1, 1], [], []>} : vector<8x8xbf16>, vector<8x8xbf16>, vector<8x8xf32> -> vector<8x8xf32>
    %80 = vector.extract_strided_slice %22 {offsets = [0, 24], sizes = [8, 8], strides = [1, 1]} : vector<8x96xbf16> to vector<8x8xbf16>
    %81 = vector.extract_strided_slice %22 {offsets = [0, 56], sizes = [8, 8], strides = [1, 1]} : vector<8x96xbf16> to vector<8x8xbf16>
    %82 = vector.extract_strided_slice %22 {offsets = [0, 88], sizes = [8, 8], strides = [1, 1]} : vector<8x96xbf16> to vector<8x8xbf16>
    %cst_27 = arith.constant dense<0.000000e+00> : vector<8x8xf32>
    %83 = tpu.matmul %80, %81, %cst_27 {dimension_numbers = #tpu.dot_dimension_numbers<[1], [1], [0], [0], [0, 0, 1, 0], [], []>} : vector<8x8xbf16>, vector<8x8xbf16>, vector<8x8xf32> -> vector<8x8xf32>
    %84 = vector.extract_strided_slice %3 {offsets = [3, 0, 0], sizes = [1, 8, 8], strides = [1, 1, 1]} : vector<4x8x8xf32> to vector<1x8x8xf32>
    %85 = vector.shape_cast %84 : vector<1x8x8xf32> to vector<8x8xf32>
    %86 = arith.addf %83, %85 : vector<8x8xf32>
    %cst_28 = arith.constant dense<0xFF800000> : vector<8xf32>
    %87 = vector.multi_reduction <maximumf>, %86, %cst_28 [1] : vector<8x8xf32> to vector<8xf32>
    %88 = vector.shape_cast %87 : vector<8xf32> to vector<8x1xf32>
    %89 = vector.broadcast %88 : vector<8x1xf32> to vector<8x8xf32>
    %90 = arith.subf %86, %89 : vector<8x8xf32>
    %91 = math.exp %90 : vector<8x8xf32>
    %cst_29 = arith.constant dense<0.000000e+00> : vector<8xf32>
    %92 = vector.multi_reduction <add>, %91, %cst_29 [1] : vector<8x8xf32> to vector<8xf32>
    %93 = vector.shape_cast %92 : vector<8xf32> to vector<8x1xf32>
    %94 = tpu.reciprocal %93 {approx = true} : vector<8x1xf32> -> vector<8x1xf32>
    %95 = vector.broadcast %94 : vector<8x1xf32> to vector<8x8xf32>
    %96 = arith.mulf %91, %95 : vector<8x8xf32>
    %97 = arith.truncf %96 : vector<8x8xf32> to vector<8x8xbf16>
    %cst_30 = arith.constant dense<0.000000e+00> : vector<8x8xf32>
    %98 = tpu.matmul %97, %82, %cst_30 {dimension_numbers = #tpu.dot_dimension_numbers<[1], [0], [0], [1], [0, 0, 1, 1], [], []>} : vector<8x8xbf16>, vector<8x8xbf16>, vector<8x8xf32> -> vector<8x8xf32>
    %99 = tpu.concatenate %41, %60, %79, %98 in 1 : vector<8x8xf32>, vector<8x8xf32>, vector<8x8xf32>, vector<8x8xf32> -> vector<8x32xf32>
    %100 = arith.truncf %99 : vector<8x32xf32> to vector<8x32xbf16>
    %c0_31 = arith.constant 0 : index
    %c0_32 = arith.constant 0 : index
    %c0_33 = arith.constant 0 : index
    %101 = vector.load %arg5[%c0_31, %c0_32, %c0_33] : memref<2x32x32xbf16, #tpu.memory_space<vmem>>, vector<1x32x32xbf16>
    %102 = vector.shape_cast %101 : vector<1x32x32xbf16> to vector<32x32xbf16>
    %cst_34 = arith.constant dense<0.000000e+00> : vector<8x32xf32>
    %103 = tpu.matmul %100, %102, %cst_34 {dimension_numbers = #tpu.dot_dimension_numbers<[1], [0], [0], [1], [0, 0, 1, 1], [], []>} : vector<8x32xbf16>, vector<32x32xbf16>, vector<8x32xf32> -> vector<8x32xf32>
    %104 = arith.addf %1, %103 : vector<8x32xf32>
    %c0_35 = arith.constant 0 : index
    %c0_36 = arith.constant 0 : index
    %c0_37 = arith.constant 0 : index
    %105 = vector.load %arg6[%c0_35, %c0_36, %c0_37] : memref<2x1x32xf32, #tpu.memory_space<vmem>>, vector<1x1x32xf32>
    %106 = vector.shape_cast %105 : vector<1x1x32xf32> to vector<1x32xf32>
    %107 = arith.mulf %104, %104 : vector<8x32xf32>
    %cst_38 = arith.constant dense<0.000000e+00> : vector<8xf32>
    %108 = vector.multi_reduction <add>, %107, %cst_38 [1] : vector<8x32xf32> to vector<8xf32>
    %109 = vector.shape_cast %108 : vector<8xf32> to vector<8x1xf32>
    %cst_39 = arith.constant 3.200000e+01 : f32
    %110 = vector.broadcast %cst_39 : f32 to vector<8x1xf32>
    %111 = arith.divf %109, %110 : vector<8x1xf32>
    %cst_40 = arith.constant 9.99999997E-7 : f32
    %112 = vector.broadcast %cst_40 : f32 to vector<8x1xf32>
    %113 = arith.addf %111, %112 : vector<8x1xf32>
    %114 = math.rsqrt %113 : vector<8x1xf32>
    %115 = vector.broadcast %114 : vector<8x1xf32> to vector<8x32xf32>
    %116 = arith.mulf %104, %115 : vector<8x32xf32>
    %117 = vector.broadcast %106 : vector<1x32xf32> to vector<8x32xf32>
    %118 = arith.mulf %116, %117 : vector<8x32xf32>
    %119 = arith.truncf %118 : vector<8x32xf32> to vector<8x32xbf16>
    %c0_41 = arith.constant 0 : index
    %c0_42 = arith.constant 0 : index
    %c0_43 = arith.constant 0 : index
    %120 = vector.load %arg7[%c0_41, %c0_42, %c0_43] : memref<2x32x128xbf16, #tpu.memory_space<vmem>>, vector<1x32x128xbf16>
    %121 = vector.shape_cast %120 : vector<1x32x128xbf16> to vector<32x128xbf16>
    %cst_44 = arith.constant dense<0.000000e+00> : vector<8x128xf32>
    %122 = tpu.matmul %119, %121, %cst_44 {dimension_numbers = #tpu.dot_dimension_numbers<[1], [0], [0], [1], [0, 0, 1, 1], [], []>} : vector<8x32xbf16>, vector<32x128xbf16>, vector<8x128xf32> -> vector<8x128xf32>
    %123 = vector.extract_strided_slice %122 {offsets = [0, 0], sizes = [8, 64], strides = [1, 1]} : vector<8x128xf32> to vector<8x64xf32>
    %124 = vector.extract_strided_slice %122 {offsets = [0, 64], sizes = [8, 64], strides = [1, 1]} : vector<8x128xf32> to vector<8x64xf32>
    %cst_45 = arith.constant 5.000000e-01 : f32
    %125 = vector.broadcast %cst_45 : f32 to vector<8x64xf32>
    %126 = arith.mulf %125, %123 : vector<8x64xf32>
    %cst_46 = arith.constant 0.797884583 : f32
    %127 = vector.broadcast %cst_46 : f32 to vector<8x64xf32>
    %128 = arith.mulf %127, %123 : vector<8x64xf32>
    %cst_47 = arith.constant 4.471500e-02 : f32
    %129 = vector.broadcast %cst_47 : f32 to vector<8x64xf32>
    %130 = arith.mulf %129, %123 : vector<8x64xf32>
    %131 = arith.mulf %130, %123 : vector<8x64xf32>
    %cst_48 = arith.constant 1.000000e+00 : f32
    %132 = vector.broadcast %cst_48 : f32 to vector<8x64xf32>
    %133 = arith.addf %132, %131 : vector<8x64xf32>
    %134 = arith.mulf %128, %133 : vector<8x64xf32>
    %135 = math.tanh %134 : vector<8x64xf32>
    %cst_49 = arith.constant 1.000000e+00 : f32
    %136 = vector.broadcast %cst_49 : f32 to vector<8x64xf32>
    %137 = arith.addf %136, %135 : vector<8x64xf32>
    %138 = arith.mulf %126, %137 : vector<8x64xf32>
    %139 = arith.mulf %138, %124 : vector<8x64xf32>
    %140 = arith.truncf %139 : vector<8x64xf32> to vector<8x64xbf16>
    %c0_50 = arith.constant 0 : index
    %c0_51 = arith.constant 0 : index
    %c0_52 = arith.constant 0 : index
    %141 = vector.load %arg8[%c0_50, %c0_51, %c0_52] : memref<2x64x32xbf16, #tpu.memory_space<vmem>>, vector<1x64x32xbf16>
    %142 = vector.shape_cast %141 : vector<1x64x32xbf16> to vector<64x32xbf16>
    %cst_53 = arith.constant dense<0.000000e+00> : vector<8x32xf32>
    %143 = tpu.matmul %140, %142, %cst_53 {dimension_numbers = #tpu.dot_dimension_numbers<[1], [0], [0], [1], [0, 0, 1, 1], [], []>} : vector<8x64xbf16>, vector<64x32xbf16>, vector<8x32xf32> -> vector<8x32xf32>
    %144 = arith.addf %104, %143 : vector<8x32xf32>
    %c1 = arith.constant 1 : index
    %c0_54 = arith.constant 0 : index
    %c0_55 = arith.constant 0 : index
    %145 = vector.load %arg3[%c1, %c0_54, %c0_55] : memref<2x1x32xf32, #tpu.memory_space<vmem>>, vector<1x1x32xf32>
    %146 = vector.shape_cast %145 : vector<1x1x32xf32> to vector<1x32xf32>
    %147 = arith.mulf %144, %144 : vector<8x32xf32>
    %cst_56 = arith.constant dense<0.000000e+00> : vector<8xf32>
    %148 = vector.multi_reduction <add>, %147, %cst_56 [1] : vector<8x32xf32> to vector<8xf32>
    %149 = vector.shape_cast %148 : vector<8xf32> to vector<8x1xf32>
    %cst_57 = arith.constant 3.200000e+01 : f32
    %150 = vector.broadcast %cst_57 : f32 to vector<8x1xf32>
    %151 = arith.divf %149, %150 : vector<8x1xf32>
    %cst_58 = arith.constant 9.99999997E-7 : f32
    %152 = vector.broadcast %cst_58 : f32 to vector<8x1xf32>
    %153 = arith.addf %151, %152 : vector<8x1xf32>
    %154 = math.rsqrt %153 : vector<8x1xf32>
    %155 = vector.broadcast %154 : vector<8x1xf32> to vector<8x32xf32>
    %156 = arith.mulf %144, %155 : vector<8x32xf32>
    %157 = vector.broadcast %146 : vector<1x32xf32> to vector<8x32xf32>
    %158 = arith.mulf %156, %157 : vector<8x32xf32>
    %159 = arith.truncf %158 : vector<8x32xf32> to vector<8x32xbf16>
    %c1_59 = arith.constant 1 : index
    %c0_60 = arith.constant 0 : index
    %c0_61 = arith.constant 0 : index
    %160 = vector.load %arg4[%c1_59, %c0_60, %c0_61] : memref<2x32x96xbf16, #tpu.memory_space<vmem>>, vector<1x32x96xbf16>
    %161 = vector.shape_cast %160 : vector<1x32x96xbf16> to vector<32x96xbf16>
    %cst_62 = arith.constant dense<0.000000e+00> : vector<8x96xf32>
    %162 = tpu.matmul %159, %161, %cst_62 {dimension_numbers = #tpu.dot_dimension_numbers<[1], [0], [0], [1], [0, 0, 1, 1], [], []>} : vector<8x32xbf16>, vector<32x96xbf16>, vector<8x96xf32> -> vector<8x96xf32>
    %163 = arith.truncf %162 : vector<8x96xf32> to vector<8x96xbf16>
    %164 = vector.extract_strided_slice %163 {offsets = [0, 0], sizes = [8, 8], strides = [1, 1]} : vector<8x96xbf16> to vector<8x8xbf16>
    %165 = vector.extract_strided_slice %163 {offsets = [0, 32], sizes = [8, 8], strides = [1, 1]} : vector<8x96xbf16> to vector<8x8xbf16>
    %166 = vector.extract_strided_slice %163 {offsets = [0, 64], sizes = [8, 8], strides = [1, 1]} : vector<8x96xbf16> to vector<8x8xbf16>
    %cst_63 = arith.constant dense<0.000000e+00> : vector<8x8xf32>
    %167 = tpu.matmul %164, %165, %cst_63 {dimension_numbers = #tpu.dot_dimension_numbers<[1], [1], [0], [0], [0, 0, 1, 0], [], []>} : vector<8x8xbf16>, vector<8x8xbf16>, vector<8x8xf32> -> vector<8x8xf32>
    %168 = vector.extract_strided_slice %3 {offsets = [0, 0, 0], sizes = [1, 8, 8], strides = [1, 1, 1]} : vector<4x8x8xf32> to vector<1x8x8xf32>
    %169 = vector.shape_cast %168 : vector<1x8x8xf32> to vector<8x8xf32>
    %170 = arith.addf %167, %169 : vector<8x8xf32>
    %cst_64 = arith.constant dense<0xFF800000> : vector<8xf32>
    %171 = vector.multi_reduction <maximumf>, %170, %cst_64 [1] : vector<8x8xf32> to vector<8xf32>
    %172 = vector.shape_cast %171 : vector<8xf32> to vector<8x1xf32>
    %173 = vector.broadcast %172 : vector<8x1xf32> to vector<8x8xf32>
    %174 = arith.subf %170, %173 : vector<8x8xf32>
    %175 = math.exp %174 : vector<8x8xf32>
    %cst_65 = arith.constant dense<0.000000e+00> : vector<8xf32>
    %176 = vector.multi_reduction <add>, %175, %cst_65 [1] : vector<8x8xf32> to vector<8xf32>
    %177 = vector.shape_cast %176 : vector<8xf32> to vector<8x1xf32>
    %178 = tpu.reciprocal %177 {approx = true} : vector<8x1xf32> -> vector<8x1xf32>
    %179 = vector.broadcast %178 : vector<8x1xf32> to vector<8x8xf32>
    %180 = arith.mulf %175, %179 : vector<8x8xf32>
    %181 = arith.truncf %180 : vector<8x8xf32> to vector<8x8xbf16>
    %cst_66 = arith.constant dense<0.000000e+00> : vector<8x8xf32>
    %182 = tpu.matmul %181, %166, %cst_66 {dimension_numbers = #tpu.dot_dimension_numbers<[1], [0], [0], [1], [0, 0, 1, 1], [], []>} : vector<8x8xbf16>, vector<8x8xbf16>, vector<8x8xf32> -> vector<8x8xf32>
    %183 = vector.extract_strided_slice %163 {offsets = [0, 8], sizes = [8, 8], strides = [1, 1]} : vector<8x96xbf16> to vector<8x8xbf16>
    %184 = vector.extract_strided_slice %163 {offsets = [0, 40], sizes = [8, 8], strides = [1, 1]} : vector<8x96xbf16> to vector<8x8xbf16>
    %185 = vector.extract_strided_slice %163 {offsets = [0, 72], sizes = [8, 8], strides = [1, 1]} : vector<8x96xbf16> to vector<8x8xbf16>
    %cst_67 = arith.constant dense<0.000000e+00> : vector<8x8xf32>
    %186 = tpu.matmul %183, %184, %cst_67 {dimension_numbers = #tpu.dot_dimension_numbers<[1], [1], [0], [0], [0, 0, 1, 0], [], []>} : vector<8x8xbf16>, vector<8x8xbf16>, vector<8x8xf32> -> vector<8x8xf32>
    %187 = vector.extract_strided_slice %3 {offsets = [1, 0, 0], sizes = [1, 8, 8], strides = [1, 1, 1]} : vector<4x8x8xf32> to vector<1x8x8xf32>
    %188 = vector.shape_cast %187 : vector<1x8x8xf32> to vector<8x8xf32>
    %189 = arith.addf %186, %188 : vector<8x8xf32>
    %cst_68 = arith.constant dense<0xFF800000> : vector<8xf32>
    %190 = vector.multi_reduction <maximumf>, %189, %cst_68 [1] : vector<8x8xf32> to vector<8xf32>
    %191 = vector.shape_cast %190 : vector<8xf32> to vector<8x1xf32>
    %192 = vector.broadcast %191 : vector<8x1xf32> to vector<8x8xf32>
    %193 = arith.subf %189, %192 : vector<8x8xf32>
    %194 = math.exp %193 : vector<8x8xf32>
    %cst_69 = arith.constant dense<0.000000e+00> : vector<8xf32>
    %195 = vector.multi_reduction <add>, %194, %cst_69 [1] : vector<8x8xf32> to vector<8xf32>
    %196 = vector.shape_cast %195 : vector<8xf32> to vector<8x1xf32>
    %197 = tpu.reciprocal %196 {approx = true} : vector<8x1xf32> -> vector<8x1xf32>
    %198 = vector.broadcast %197 : vector<8x1xf32> to vector<8x8xf32>
    %199 = arith.mulf %194, %198 : vector<8x8xf32>
    %200 = arith.truncf %199 : vector<8x8xf32> to vector<8x8xbf16>
    %cst_70 = arith.constant dense<0.000000e+00> : vector<8x8xf32>
    %201 = tpu.matmul %200, %185, %cst_70 {dimension_numbers = #tpu.dot_dimension_numbers<[1], [0], [0], [1], [0, 0, 1, 1], [], []>} : vector<8x8xbf16>, vector<8x8xbf16>, vector<8x8xf32> -> vector<8x8xf32>
    %202 = vector.extract_strided_slice %163 {offsets = [0, 16], sizes = [8, 8], strides = [1, 1]} : vector<8x96xbf16> to vector<8x8xbf16>
    %203 = vector.extract_strided_slice %163 {offsets = [0, 48], sizes = [8, 8], strides = [1, 1]} : vector<8x96xbf16> to vector<8x8xbf16>
    %204 = vector.extract_strided_slice %163 {offsets = [0, 80], sizes = [8, 8], strides = [1, 1]} : vector<8x96xbf16> to vector<8x8xbf16>
    %cst_71 = arith.constant dense<0.000000e+00> : vector<8x8xf32>
    %205 = tpu.matmul %202, %203, %cst_71 {dimension_numbers = #tpu.dot_dimension_numbers<[1], [1], [0], [0], [0, 0, 1, 0], [], []>} : vector<8x8xbf16>, vector<8x8xbf16>, vector<8x8xf32> -> vector<8x8xf32>
    %206 = vector.extract_strided_slice %3 {offsets = [2, 0, 0], sizes = [1, 8, 8], strides = [1, 1, 1]} : vector<4x8x8xf32> to vector<1x8x8xf32>
    %207 = vector.shape_cast %206 : vector<1x8x8xf32> to vector<8x8xf32>
    %208 = arith.addf %205, %207 : vector<8x8xf32>
    %cst_72 = arith.constant dense<0xFF800000> : vector<8xf32>
    %209 = vector.multi_reduction <maximumf>, %208, %cst_72 [1] : vector<8x8xf32> to vector<8xf32>
    %210 = vector.shape_cast %209 : vector<8xf32> to vector<8x1xf32>
    %211 = vector.broadcast %210 : vector<8x1xf32> to vector<8x8xf32>
    %212 = arith.subf %208, %211 : vector<8x8xf32>
    %213 = math.exp %212 : vector<8x8xf32>
    %cst_73 = arith.constant dense<0.000000e+00> : vector<8xf32>
    %214 = vector.multi_reduction <add>, %213, %cst_73 [1] : vector<8x8xf32> to vector<8xf32>
    %215 = vector.shape_cast %214 : vector<8xf32> to vector<8x1xf32>
    %216 = tpu.reciprocal %215 {approx = true} : vector<8x1xf32> -> vector<8x1xf32>
    %217 = vector.broadcast %216 : vector<8x1xf32> to vector<8x8xf32>
    %218 = arith.mulf %213, %217 : vector<8x8xf32>
    %219 = arith.truncf %218 : vector<8x8xf32> to vector<8x8xbf16>
    %cst_74 = arith.constant dense<0.000000e+00> : vector<8x8xf32>
    %220 = tpu.matmul %219, %204, %cst_74 {dimension_numbers = #tpu.dot_dimension_numbers<[1], [0], [0], [1], [0, 0, 1, 1], [], []>} : vector<8x8xbf16>, vector<8x8xbf16>, vector<8x8xf32> -> vector<8x8xf32>
    %221 = vector.extract_strided_slice %163 {offsets = [0, 24], sizes = [8, 8], strides = [1, 1]} : vector<8x96xbf16> to vector<8x8xbf16>
    %222 = vector.extract_strided_slice %163 {offsets = [0, 56], sizes = [8, 8], strides = [1, 1]} : vector<8x96xbf16> to vector<8x8xbf16>
    %223 = vector.extract_strided_slice %163 {offsets = [0, 88], sizes = [8, 8], strides = [1, 1]} : vector<8x96xbf16> to vector<8x8xbf16>
    %cst_75 = arith.constant dense<0.000000e+00> : vector<8x8xf32>
    %224 = tpu.matmul %221, %222, %cst_75 {dimension_numbers = #tpu.dot_dimension_numbers<[1], [1], [0], [0], [0, 0, 1, 0], [], []>} : vector<8x8xbf16>, vector<8x8xbf16>, vector<8x8xf32> -> vector<8x8xf32>
    %225 = vector.extract_strided_slice %3 {offsets = [3, 0, 0], sizes = [1, 8, 8], strides = [1, 1, 1]} : vector<4x8x8xf32> to vector<1x8x8xf32>
    %226 = vector.shape_cast %225 : vector<1x8x8xf32> to vector<8x8xf32>
    %227 = arith.addf %224, %226 : vector<8x8xf32>
    %cst_76 = arith.constant dense<0xFF800000> : vector<8xf32>
    %228 = vector.multi_reduction <maximumf>, %227, %cst_76 [1] : vector<8x8xf32> to vector<8xf32>
    %229 = vector.shape_cast %228 : vector<8xf32> to vector<8x1xf32>
    %230 = vector.broadcast %229 : vector<8x1xf32> to vector<8x8xf32>
    %231 = arith.subf %227, %230 : vector<8x8xf32>
    %232 = math.exp %231 : vector<8x8xf32>
    %cst_77 = arith.constant dense<0.000000e+00> : vector<8xf32>
    %233 = vector.multi_reduction <add>, %232, %cst_77 [1] : vector<8x8xf32> to vector<8xf32>
    %234 = vector.shape_cast %233 : vector<8xf32> to vector<8x1xf32>
    %235 = tpu.reciprocal %234 {approx = true} : vector<8x1xf32> -> vector<8x1xf32>
    %236 = vector.broadcast %235 : vector<8x1xf32> to vector<8x8xf32>
    %237 = arith.mulf %232, %236 : vector<8x8xf32>
    %238 = arith.truncf %237 : vector<8x8xf32> to vector<8x8xbf16>
    %cst_78 = arith.constant dense<0.000000e+00> : vector<8x8xf32>
    %239 = tpu.matmul %238, %223, %cst_78 {dimension_numbers = #tpu.dot_dimension_numbers<[1], [0], [0], [1], [0, 0, 1, 1], [], []>} : vector<8x8xbf16>, vector<8x8xbf16>, vector<8x8xf32> -> vector<8x8xf32>
    %240 = tpu.concatenate %182, %201, %220, %239 in 1 : vector<8x8xf32>, vector<8x8xf32>, vector<8x8xf32>, vector<8x8xf32> -> vector<8x32xf32>
    %241 = arith.truncf %240 : vector<8x32xf32> to vector<8x32xbf16>
    %c1_79 = arith.constant 1 : index
    %c0_80 = arith.constant 0 : index
    %c0_81 = arith.constant 0 : index
    %242 = vector.load %arg5[%c1_79, %c0_80, %c0_81] : memref<2x32x32xbf16, #tpu.memory_space<vmem>>, vector<1x32x32xbf16>
    %243 = vector.shape_cast %242 : vector<1x32x32xbf16> to vector<32x32xbf16>
    %cst_82 = arith.constant dense<0.000000e+00> : vector<8x32xf32>
    %244 = tpu.matmul %241, %243, %cst_82 {dimension_numbers = #tpu.dot_dimension_numbers<[1], [0], [0], [1], [0, 0, 1, 1], [], []>} : vector<8x32xbf16>, vector<32x32xbf16>, vector<8x32xf32> -> vector<8x32xf32>
    %245 = arith.addf %144, %244 : vector<8x32xf32>
    %c1_83 = arith.constant 1 : index
    %c0_84 = arith.constant 0 : index
    %c0_85 = arith.constant 0 : index
    %246 = vector.load %arg6[%c1_83, %c0_84, %c0_85] : memref<2x1x32xf32, #tpu.memory_space<vmem>>, vector<1x1x32xf32>
    %247 = vector.shape_cast %246 : vector<1x1x32xf32> to vector<1x32xf32>
    %248 = arith.mulf %245, %245 : vector<8x32xf32>
    %cst_86 = arith.constant dense<0.000000e+00> : vector<8xf32>
    %249 = vector.multi_reduction <add>, %248, %cst_86 [1] : vector<8x32xf32> to vector<8xf32>
    %250 = vector.shape_cast %249 : vector<8xf32> to vector<8x1xf32>
    %cst_87 = arith.constant 3.200000e+01 : f32
    %251 = vector.broadcast %cst_87 : f32 to vector<8x1xf32>
    %252 = arith.divf %250, %251 : vector<8x1xf32>
    %cst_88 = arith.constant 9.99999997E-7 : f32
    %253 = vector.broadcast %cst_88 : f32 to vector<8x1xf32>
    %254 = arith.addf %252, %253 : vector<8x1xf32>
    %255 = math.rsqrt %254 : vector<8x1xf32>
    %256 = vector.broadcast %255 : vector<8x1xf32> to vector<8x32xf32>
    %257 = arith.mulf %245, %256 : vector<8x32xf32>
    %258 = vector.broadcast %247 : vector<1x32xf32> to vector<8x32xf32>
    %259 = arith.mulf %257, %258 : vector<8x32xf32>
    %260 = arith.truncf %259 : vector<8x32xf32> to vector<8x32xbf16>
    %c1_89 = arith.constant 1 : index
    %c0_90 = arith.constant 0 : index
    %c0_91 = arith.constant 0 : index
    %261 = vector.load %arg7[%c1_89, %c0_90, %c0_91] : memref<2x32x128xbf16, #tpu.memory_space<vmem>>, vector<1x32x128xbf16>
    %262 = vector.shape_cast %261 : vector<1x32x128xbf16> to vector<32x128xbf16>
    %cst_92 = arith.constant dense<0.000000e+00> : vector<8x128xf32>
    %263 = tpu.matmul %260, %262, %cst_92 {dimension_numbers = #tpu.dot_dimension_numbers<[1], [0], [0], [1], [0, 0, 1, 1], [], []>} : vector<8x32xbf16>, vector<32x128xbf16>, vector<8x128xf32> -> vector<8x128xf32>
    %264 = vector.extract_strided_slice %263 {offsets = [0, 0], sizes = [8, 64], strides = [1, 1]} : vector<8x128xf32> to vector<8x64xf32>
    %265 = vector.extract_strided_slice %263 {offsets = [0, 64], sizes = [8, 64], strides = [1, 1]} : vector<8x128xf32> to vector<8x64xf32>
    %cst_93 = arith.constant 5.000000e-01 : f32
    %266 = vector.broadcast %cst_93 : f32 to vector<8x64xf32>
    %267 = arith.mulf %266, %264 : vector<8x64xf32>
    %cst_94 = arith.constant 0.797884583 : f32
    %268 = vector.broadcast %cst_94 : f32 to vector<8x64xf32>
    %269 = arith.mulf %268, %264 : vector<8x64xf32>
    %cst_95 = arith.constant 4.471500e-02 : f32
    %270 = vector.broadcast %cst_95 : f32 to vector<8x64xf32>
    %271 = arith.mulf %270, %264 : vector<8x64xf32>
    %272 = arith.mulf %271, %264 : vector<8x64xf32>
    %cst_96 = arith.constant 1.000000e+00 : f32
    %273 = vector.broadcast %cst_96 : f32 to vector<8x64xf32>
    %274 = arith.addf %273, %272 : vector<8x64xf32>
    %275 = arith.mulf %269, %274 : vector<8x64xf32>
    %276 = math.tanh %275 : vector<8x64xf32>
    %cst_97 = arith.constant 1.000000e+00 : f32
    %277 = vector.broadcast %cst_97 : f32 to vector<8x64xf32>
    %278 = arith.addf %277, %276 : vector<8x64xf32>
    %279 = arith.mulf %267, %278 : vector<8x64xf32>
    %280 = arith.mulf %279, %265 : vector<8x64xf32>
    %281 = arith.truncf %280 : vector<8x64xf32> to vector<8x64xbf16>
    %c1_98 = arith.constant 1 : index
    %c0_99 = arith.constant 0 : index
    %c0_100 = arith.constant 0 : index
    %282 = vector.load %arg8[%c1_98, %c0_99, %c0_100] : memref<2x64x32xbf16, #tpu.memory_space<vmem>>, vector<1x64x32xbf16>
    %283 = vector.shape_cast %282 : vector<1x64x32xbf16> to vector<64x32xbf16>
    %cst_101 = arith.constant dense<0.000000e+00> : vector<8x32xf32>
    %284 = tpu.matmul %281, %283, %cst_101 {dimension_numbers = #tpu.dot_dimension_numbers<[1], [0], [0], [1], [0, 0, 1, 1], [], []>} : vector<8x64xbf16>, vector<64x32xbf16>, vector<8x32xf32> -> vector<8x32xf32>
    %285 = arith.addf %245, %284 : vector<8x32xf32>
    %c0_102 = arith.constant 0 : index
    %c0_103 = arith.constant 0 : index
    %286 = vector.load %arg9[%c0_102, %c0_103] : memref<1x32xf32, #tpu.memory_space<vmem>>, vector<1x32xf32>
    %287 = arith.mulf %285, %285 : vector<8x32xf32>
    %cst_104 = arith.constant dense<0.000000e+00> : vector<8xf32>
    %288 = vector.multi_reduction <add>, %287, %cst_104 [1] : vector<8x32xf32> to vector<8xf32>
    %289 = vector.shape_cast %288 : vector<8xf32> to vector<8x1xf32>
    %cst_105 = arith.constant 3.200000e+01 : f32
    %290 = vector.broadcast %cst_105 : f32 to vector<8x1xf32>
    %291 = arith.divf %289, %290 : vector<8x1xf32>
    %cst_106 = arith.constant 9.99999997E-7 : f32
    %292 = vector.broadcast %cst_106 : f32 to vector<8x1xf32>
    %293 = arith.addf %291, %292 : vector<8x1xf32>
    %294 = math.rsqrt %293 : vector<8x1xf32>
    %295 = vector.broadcast %294 : vector<8x1xf32> to vector<8x32xf32>
    %296 = arith.mulf %285, %295 : vector<8x32xf32>
    %297 = vector.broadcast %286 : vector<1x32xf32> to vector<8x32xf32>
    %298 = arith.mulf %296, %297 : vector<8x32xf32>
    %c0_107 = arith.constant 0 : index
    %c0_108 = arith.constant 0 : index
    %c0_109 = arith.constant 0 : index
    %299 = vector.load %arg10[%c0_107, %c0_108, %c0_109] : memref<1x8x32xf32, #tpu.memory_space<vmem>>, vector<1x8x32xf32>
    %300 = vector.shape_cast %299 : vector<1x8x32xf32> to vector<8x32xf32>
    %301 = vector.shape_cast %298 : vector<8x32xf32> to vector<1x8x32xf32>
    tpu.vector_store %arg10[%c0_107, %c0_108, %c0_109], %301 {strides = array<i32>} : memref<1x8x32xf32, #tpu.memory_space<vmem>>, vector<1x8x32xf32>,
    return
  }
  func.func @transform_0(%arg0: i32) -> (i32, i32, i32) {
    %c0_i32 = arith.constant 0 : i32
    %c0_i32_0 = arith.constant 0 : i32
    %c0_i32_1 = arith.constant 0 : i32
    return %arg0, %c0_i32, %c0_i32_0 : i32, i32, i32
  }
  func.func @transform_1(%arg0: i32) -> (i32, i32, i32, i32) {
    %c0_i32 = arith.constant 0 : i32
    %c0_i32_0 = arith.constant 0 : i32
    %c0_i32_1 = arith.constant 0 : i32
    %c0_i32_2 = arith.constant 0 : i32
    return %arg0, %c0_i32, %c0_i32_0, %c0_i32_1 : i32, i32, i32, i32
  }
  func.func @transform_2(%arg0: i32) -> (i32, i32, i32) {
    %c0_i32 = arith.constant 0 : i32
    %c0_i32_0 = arith.constant 0 : i32
    %c0_i32_1 = arith.constant 0 : i32
    %c0_i32_2 = arith.constant 0 : i32
    return %c0_i32, %c0_i32_0, %c0_i32_1 : i32, i32, i32
  }
  func.func @transform_3(%arg0: i32) -> (i32, i32, i32) {
    %c0_i32 = arith.constant 0 : i32
    %c0_i32_0 = arith.constant 0 : i32
    %c0_i32_1 = arith.constant 0 : i32
    %c0_i32_2 = arith.constant 0 : i32
    return %c0_i32, %c0_i32_0, %c0_i32_1 : i32, i32, i32
  }
  func.func @transform_4(%arg0: i32) -> (i32, i32, i32) {
    %c0_i32 = arith.constant 0 : i32
    %c0_i32_0 = arith.constant 0 : i32
    %c0_i32_1 = arith.constant 0 : i32
    %c0_i32_2 = arith.constant 0 : i32
    return %c0_i32, %c0_i32_0, %c0_i32_1 : i32, i32, i32
  }
  func.func @transform_5(%arg0: i32) -> (i32, i32, i32) {
    %c0_i32 = arith.constant 0 : i32
    %c0_i32_0 = arith.constant 0 : i32
    %c0_i32_1 = arith.constant 0 : i32
    %c0_i32_2 = arith.constant 0 : i32
    return %c0_i32, %c0_i32_0, %c0_i32_1 : i32, i32, i32
  }
  func.func @transform_6(%arg0: i32) -> (i32, i32, i32) {
    %c0_i32 = arith.constant 0 : i32
    %c0_i32_0 = arith.constant 0 : i32
    %c0_i32_1 = arith.constant 0 : i32
    %c0_i32_2 = arith.constant 0 : i32
    return %c0_i32, %c0_i32_0, %c0_i32_1 : i32, i32, i32
  }
  func.func @transform_7(%arg0: i32) -> (i32, i32, i32) {
    %c0_i32 = arith.constant 0 : i32
    %c0_i32_0 = arith.constant 0 : i32
    %c0_i32_1 = arith.constant 0 : i32
    %c0_i32_2 = arith.constant 0 : i32
    return %c0_i32, %c0_i32_0, %c0_i32_1 : i32, i32, i32
  }
  func.func @transform_8(%arg0: i32) -> (i32, i32) {
    %c0_i32 = arith.constant 0 : i32
    %c0_i32_0 = arith.constant 0 : i32
    %c0_i32_1 = arith.constant 0 : i32
    return %c0_i32, %c0_i32_0 : i32, i32
  }
  func.func @transform_9(%arg0: i32) -> (i32, i32, i32) {
    %c0_i32 = arith.constant 0 : i32
    %c0_i32_0 = arith.constant 0 : i32
    %c0_i32_1 = arith.constant 0 : i32
    return %arg0, %c0_i32, %c0_i32_0 : i32, i32, i32
  }
}

</mosaic_0001>

<llo_original>
// kernel: t5_stack_forward.1
$region0: #{t5_stack_forward.1}
  #allocation0 [shape = 'u32[]', space=smem, size = 0x4, offset = 0x4, fixed_abs, tag = 'smem constant byte address 0x4 - core index']
  #allocation1 [shape = 'u32[72,128]{1,0:T(1,128)}', space=vmem, size = 0x9000, scoped, tag = 'internal scratch']
  %s0 = inlined_call_operand.vmem [shape: f32[2,8,32], index: 0, kind: input, shape index: {}]
  %s1 = inlined_call_operand.vmem [shape: f32[2,4,8,8], index: 1, kind: input, shape index: {}]
  %s2 = inlined_call_operand.vmem [shape: f32[2,1,32], index: 2, kind: input, shape index: {}]
  %s3 = inlined_call_operand.vmem [shape: bf16[2,32,96], index: 3, kind: input, shape index: {}]
  %s4 = inlined_call_operand.vmem [shape: bf16[2,32,32], index: 4, kind: input, shape index: {}]
  %s5 = inlined_call_operand.vmem [shape: f32[2,1,32], index: 5, kind: input, shape index: {}]
  %s6 = inlined_call_operand.vmem [shape: bf16[2,32,128], index: 6, kind: input, shape index: {}]
  %s7 = inlined_call_operand.vmem [shape: bf16[2,64,32], index: 7, kind: input, shape index: {}]
  %s8 = inlined_call_operand.vmem [shape: f32[1,32], index: 8, kind: input, shape index: {}]
  %s9 = inlined_call_operand.hbm [shape: f32[2,8,32], index: 9, kind: output, shape index: {}]
  %s10 = sld [smem:[#allocation0]]
  $region69: #{t5_stack_forward.1} parent=0
    _
  %s12 = ssub.s32 1, %s10
  %s13 = scalar_select 0, %s12, %s10
  $region1: #{t5_stack_forward.1} parent=0
    #allocation2 [shape = 'u8[8192]{0}', space=vmem, size = 0x2000, scoped, tag = 'output window, operand 0']
    #allocation3 [shape = 's32[2]{0}', space=sflag, size = 0x8, scoped, tag = 'scoped memory for t5_stack_forward.1']
    %14 = vsyncpa [#allocation3], 0
    %s15 = scalar_lea.sflag [#allocation3], 1
    %16 = vsyncpa %s15, 0
    loop: start=0, step=1, limit=4
    $region2: #{t5_stack_forward.1} parent=1 // loop_pre_header
      _
    $region3: #{t5_stack_forward.1} parent=1 // loop_header
      %s18 = sphi 0, %s22
      %p19 = scmp.ge.s32.totalorder %s18, 4
      %s28 = sphi 0, %s30
      %s31 = sphi 0, %s28
      %s32 = sphi 0, %s31
      %s48 = sphi 0, %s32
      %s54 = sphi 0, %s56
      %s57 = sphi 0, %s54
      %s58 = sphi 0, %s57
      %s74 = sphi 0, %s58
      %s78 = sphi 0, %s78
      %s80 = sphi 0, %s78
      %s81 = sphi 0, %s80
      %s95 = sphi 0, %s81
      %s99 = sphi 0, %s99
      %s101 = sphi 0, %s99
      %s102 = sphi 0, %s101
      %s116 = sphi 0, %s102
      %s120 = sphi 0, %s120
      %s122 = sphi 0, %s120
      %s123 = sphi 0, %s122
      %s137 = sphi 0, %s123
      %s141 = sphi 0, %s141
      %s143 = sphi 0, %s141
      %s144 = sphi 0, %s143
      %s158 = sphi 0, %s144
      %s162 = sphi 0, %s162
      %s164 = sphi 0, %s162
      %s165 = sphi 0, %s164
      %s179 = sphi 0, %s165
      %s183 = sphi 0, %s183
      %s185 = sphi 0, %s183
      %s186 = sphi 0, %s185
      %s200 = sphi 0, %s186
      %s204 = sphi 0, %s204
      %s206 = sphi 0, %s204
      %s207 = sphi 0, %s206
      %s221 = sphi 0, %s207
      %s227 = sphi 0, %s229
      %s230 = sphi 0, %s227
      %s231 = sphi 0, %s230
      %s247 = sphi 0, %s231
    $region4: #{t5_stack_forward.1} parent=1 // loop_header_branch
      %21 = sbr.rel (%p19) target = $region8
    $region5: #{t5_stack_forward.1} parent=1 // loop_body
      %s23 = ssub.s32 %s18, 1
      %s24 = ssub.s32 %s18, 2
      %s25 = sadd.s32 %s18, 1
      %s26 = ssub.s32 %s18, %s25
      %p27 = scmp.eq.s32.totalorder %s26, 0
      %s29 = sadd.s32 %s28, 1
      %s30 = scalar_select %p27, %s28, %s29
      %p33 = pneg %p27
      %p34 = scmp.eq.s32.totalorder %s18, 1
      %p35 = por %p33, %p34
      %p36 = scmp.ne.s32.totalorder %s28, %s31
      %p37 = scmp.eq.s32.totalorder %s18, 0
      %p38 = por %p36, %p37
      %p39 = scmp.ne.s32.totalorder %s28, %s31
      %p40 = scmp.eq.s32.totalorder %s23, 1
      %p41 = por %p39, %p40
      %p42 = scmp.ne.s32.totalorder %s31, %s32
      %p43 = scmp.eq.s32.totalorder %s23, 0
      %p44 = por %p42, %p43
      %p45 = scmp.ne.s32.totalorder %s31, %s32
      %p46 = scmp.eq.s32.totalorder %s24, 1
      %p47 = por %p45, %p46
      %p49 = scmp.ne.s32.totalorder %s32, %s48
      %p50 = scmp.eq.s32.totalorder %s24, 0
      %p51 = por %p49, %p50
      %s52 = ssub.s32 %s18, %s25
      %p53 = scmp.eq.s32.totalorder %s52, 0
      %s55 = sadd.s32 %s54, 1
      %s56 = scalar_select %p53, %s54, %s55
      %p59 = pneg %p53
      %p60 = scmp.eq.s32.totalorder %s18, 1
      %p61 = por %p59, %p60
      %p62 = scmp.ne.s32.totalorder %s54, %s57
      %p63 = scmp.eq.s32.totalorder %s18, 0
      %p64 = por %p62, %p63
      %p65 = scmp.ne.s32.totalorder %s54, %s57
      %p66 = scmp.eq.s32.totalorder %s23, 1
      %p67 = por %p65, %p66
      %p68 = scmp.ne.s32.totalorder %s57, %s58
      %p69 = scmp.eq.s32.totalorder %s23, 0
      %p70 = por %p68, %p69
      %p71 = scmp.ne.s32.totalorder %s57, %s58
      %p72 = scmp.eq.s32.totalorder %s24, 1
      %p73 = por %p71, %p72
      %p75 = scmp.ne.s32.totalorder %s58, %s74
      %p76 = scmp.eq.s32.totalorder %s24, 0
      %p77 = por %p75, %p76
      %s79 = sadd.s32 %s78, 1
      %p82 = scmp.eq.s32.totalorder %s18, 1
      %p83 = scmp.ne.s32.totalorder %s78, %s80
      %p84 = scmp.eq.s32.totalorder %s18, 0
      %p85 = por %p83, %p84
      %p86 = scmp.ne.s32.totalorder %s78, %s80
      %p87 = scmp.eq.s32.totalorder %s23, 1
      %p88 = por %p86, %p87
      %p89 = scmp.ne.s32.totalorder %s80, %s81
      %p90 = scmp.eq.s32.totalorder %s23, 0
      %p91 = por %p89, %p90
      %p92 = scmp.ne.s32.totalorder %s80, %s81
      %p93 = scmp.eq.s32.totalorder %s24, 1
      %p94 = por %p92, %p93
      %p96 = scmp.ne.s32.totalorder %s81, %s95
      %p97 = scmp.eq.s32.totalorder %s24, 0
      %p98 = por %p96, %p97
      %s100 = sadd.s32 %s99, 1
      %p103 = scmp.eq.s32.totalorder %s18, 1
      %p104 = scmp.ne.s32.totalorder %s99, %s101
      %p105 = scmp.eq.s32.totalorder %s18, 0
      %p106 = por %p104, %p105
      %p107 = scmp.ne.s32.totalorder %s99, %s101
      %p108 = scmp.eq.s32.totalorder %s23, 1
      %p109 = por %p107, %p108
      %p110 = scmp.ne.s32.totalorder %s101, %s102
      %p111 = scmp.eq.s32.totalorder %s23, 0
      %p112 = por %p110, %p111
      %p113 = scmp.ne.s32.totalorder %s101, %s102
      %p114 = scmp.eq.s32.totalorder %s24, 1
      %p115 = por %p113, %p114
      %p117 = scmp.ne.s32.totalorder %s102, %s116
      %p118 = scmp.eq.s32.totalorder %s24, 0
      %p119 = por %p117, %p118
      %s121 = sadd.s32 %s120, 1
      %p124 = scmp.eq.s32.totalorder %s18, 1
      %p125 = scmp.ne.s32.totalorder %s120, %s122
      %p126 = scmp.eq.s32.totalorder %s18, 0
      %p127 = por %p125, %p126
      %p128 = scmp.ne.s32.totalorder %s120, %s122
      %p129 = scmp.eq.s32.totalorder %s23, 1
      %p130 = por %p128, %p129
      %p131 = scmp.ne.s32.totalorder %s122, %s123
      %p132 = scmp.eq.s32.totalorder %s23, 0
      %p133 = por %p131, %p132
      %p134 = scmp.ne.s32.totalorder %s122, %s123
      %p135 = scmp.eq.s32.totalorder %s24, 1
      %p136 = por %p134, %p135
      %p138 = scmp.ne.s32.totalorder %s123, %s137
      %p139 = scmp.eq.s32.totalorder %s24, 0
      %p140 = por %p138, %p139
      %s142 = sadd.s32 %s141, 1
      %p145 = scmp.eq.s32.totalorder %s18, 1
      %p146 = scmp.ne.s32.totalorder %s141, %s143
      %p147 = scmp.eq.s32.totalorder %s18, 0
      %p148 = por %p146, %p147
      %p149 = scmp.ne.s32.totalorder %s141, %s143
      %p150 = scmp.eq.s32.totalorder %s23, 1
      %p151 = por %p149, %p150
      %p152 = scmp.ne.s32.totalorder %s143, %s144
      %p153 = scmp.eq.s32.totalorder %s23, 0
      %p154 = por %p152, %p153
      %p155 = scmp.ne.s32.totalorder %s143, %s144
      %p156 = scmp.eq.s32.totalorder %s24, 1
      %p157 = por %p155, %p156
      %p159 = scmp.ne.s32.totalorder %s144, %s158
      %p160 = scmp.eq.s32.totalorder %s24, 0
      %p161 = por %p159, %p160
      %s163 = sadd.s32 %s162, 1
      %p166 = scmp.eq.s32.totalorder %s18, 1
      %p167 = scmp.ne.s32.totalorder %s162, %s164
      %p168 = scmp.eq.s32.totalorder %s18, 0
      %p169 = por %p167, %p168
      %p170 = scmp.ne.s32.totalorder %s162, %s164
      %p171 = scmp.eq.s32.totalorder %s23, 1
      %p172 = por %p170, %p171
      %p173 = scmp.ne.s32.totalorder %s164, %s165
      %p174 = scmp.eq.s32.totalorder %s23, 0
      %p175 = por %p173, %p174
      %p176 = scmp.ne.s32.totalorder %s164, %s165
      %p177 = scmp.eq.s32.totalorder %s24, 1
      %p178 = por %p176, %p177
      %p180 = scmp.ne.s32.totalorder %s165, %s179
      %p181 = scmp.eq.s32.totalorder %s24, 0
      %p182 = por %p180, %p181
      %s184 = sadd.s32 %s183, 1
      %p187 = scmp.eq.s32.totalorder %s18, 1
      %p188 = scmp.ne.s32.totalorder %s183, %s185
      %p189 = scmp.eq.s32.totalorder %s18, 0
      %p190 = por %p188, %p189
      %p191 = scmp.ne.s32.totalorder %s183, %s185
      %p192 = scmp.eq.s32.totalorder %s23, 1
      %p193 = por %p191, %p192
      %p194 = scmp.ne.s32.totalorder %s185, %s186
      %p195 = scmp.eq.s32.totalorder %s23, 0
      %p196 = por %p194, %p195
      %p197 = scmp.ne.s32.totalorder %s185, %s186
      %p198 = scmp.eq.s32.totalorder %s24, 1
      %p199 = por %p197, %p198
      %p201 = scmp.ne.s32.totalorder %s186, %s200
      %p202 = scmp.eq.s32.totalorder %s24, 0
      %p203 = por %p201, %p202
      %s205 = sadd.s32 %s204, 1
      %p208 = scmp.eq.s32.totalorder %s18, 1
      %p209 = scmp.ne.s32.totalorder %s204, %s206
      %p210 = scmp.eq.s32.totalorder %s18, 0
      %p211 = por %p209, %p210
      %p212 = scmp.ne.s32.totalorder %s204, %s206
      %p213 = scmp.eq.s32.totalorder %s23, 1
      %p214 = por %p212, %p213
      %p215 = scmp.ne.s32.totalorder %s206, %s207
      %p216 = scmp.eq.s32.totalorder %s23, 0
      %p217 = por %p215, %p216
      %p218 = scmp.ne.s32.totalorder %s206, %s207
      %p219 = scmp.eq.s32.totalorder %s24, 1
      %p220 = por %p218, %p219
      %p222 = scmp.ne.s32.totalorder %s207, %s221
      %p223 = scmp.eq.s32.totalorder %s24, 0
      %p224 = por %p222, %p223
      %s225 = ssub.s32 %s18, %s25
      %p226 = scmp.eq.s32.totalorder %s225, 0
      %s228 = sadd.s32 %s227, 1
      %s229 = scalar_select %p226, %s227, %s228
      %p232 = pneg %p226
      %p233 = scmp.eq.s32.totalorder %s18, 1
      %p234 = por %p232, %p233
      %p235 = scmp.ne.s32.totalorder %s227, %s230
      %p236 = scmp.eq.s32.totalorder %s18, 0
      %p237 = por %p235, %p236
      %p238 = scmp.ne.s32.totalorder %s227, %s230
      %p239 = scmp.eq.s32.totalorder %s23, 1
      %p240 = por %p238, %p239
      %p241 = scmp.ne.s32.totalorder %s230, %s231
      %p242 = scmp.eq.s32.totalorder %s23, 0
      %p243 = por %p241, %p242
      %p244 = scmp.ne.s32.totalorder %s230, %s231
      %p245 = scmp.eq.s32.totalorder %s24, 1
      %p246 = por %p244, %p245
      %p248 = scmp.ne.s32.totalorder %s231, %s247
      %p249 = scmp.eq.s32.totalorder %s24, 0
      %p250 = por %p248, %p249
      %p251 = scmp.le.s32.totalorder 1, %s18
      %p252 = scmp.lt.s32.totalorder %s18, 3
      %p253 = pnand %p251, %p252
      %p254 = pneg %p253
      // Predicated region
      $region9: #{t5_stack_forward.1} parent=5 // pred_check
        _
      $region10: #{t5_stack_forward.1} parent=5 // pred_check_branch
        %256 = sbr.rel (%p253) target = $region12
      $region11: #{t5_stack_forward.1} parent=5 // pred_region
        %s257 = ssub.s32 %s18, 1
        // Predicated region
        $region13: #{t5_stack_forward.1} parent=11 // pred_check
          %p258 = pneg %p91
        $region14: #{t5_stack_forward.1} parent=11 // pred_check_branch
          %260 = sbr.rel (%p258) target = $region16
        $region15: #{t5_stack_forward.1} parent=11 // pred_region
          _
        $region16: #{t5_stack_forward.1} parent=11 // pred_fallthru
          _
        // Predicated region
        $region17: #{t5_stack_forward.1} parent=11 // pred_check
          %p261 = pneg %p112
        $region18: #{t5_stack_forward.1} parent=11 // pred_check_branch
          %263 = sbr.rel (%p261) target = $region20
        $region19: #{t5_stack_forward.1} parent=11 // pred_region
          _
        $region20: #{t5_stack_forward.1} parent=11 // pred_fallthru
          _
        // Predicated region
        $region21: #{t5_stack_forward.1} parent=11 // pred_check
          %p264 = pneg %p133
        $region22: #{t5_stack_forward.1} parent=11 // pred_check_branch
          %266 = sbr.rel (%p264) target = $region24
        $region23: #{t5_stack_forward.1} parent=11 // pred_region
          _
        $region24: #{t5_stack_forward.1} parent=11 // pred_fallthru
          _
        // Predicated region
        $region25: #{t5_stack_forward.1} parent=11 // pred_check
          %p267 = pneg %p154
        $region26: #{t5_stack_forward.1} parent=11 // pred_check_branch
          %269 = sbr.rel (%p267) target = $region28
        $region27: #{t5_stack_forward.1} parent=11 // pred_region
          _
        $region28: #{t5_stack_forward.1} parent=11 // pred_fallthru
          _
        // Predicated region
        $region29: #{t5_stack_forward.1} parent=11 // pred_check
          %p270 = pneg %p175
        $region30: #{t5_stack_forward.1} parent=11 // pred_check_branch
          %272 = sbr.rel (%p270) target = $region32
        $region31: #{t5_stack_forward.1} parent=11 // pred_region
          _
        $region32: #{t5_stack_forward.1} parent=11 // pred_fallthru
          _
        // Predicated region
        $region33: #{t5_stack_forward.1} parent=11 // pred_check
          %p273 = pneg %p196
        $region34: #{t5_stack_forward.1} parent=11 // pred_check_branch
          %275 = sbr.rel (%p273) target = $region36
        $region35: #{t5_stack_forward.1} parent=11 // pred_region
          _
        $region36: #{t5_stack_forward.1} parent=11 // pred_fallthru
          _
        // Predicated region
        $region37: #{t5_stack_forward.1} parent=11 // pred_check
          %p276 = pneg %p217
        $region38: #{t5_stack_forward.1} parent=11 // pred_check_branch
          %278 = sbr.rel (%p276) target = $region40
        $region39: #{t5_stack_forward.1} parent=11 // pred_region
          _
        $region40: #{t5_stack_forward.1} parent=11 // pred_fallthru
          _
      $region12: #{t5_stack_forward.1} parent=5 // pred_fallthru
        _
      %p279 = scmp.lt.s32.totalorder %s18, 2
      // Predicated region
      $region41: #{t5_stack_forward.1} parent=5 // pred_check
        %p280 = pneg %p279
      $region42: #{t5_stack_forward.1} parent=5 // pred_check_branch
        %282 = sbr.rel (%p280) target = $region44
      $region43: #{t5_stack_forward.1} parent=5 // pred_region
        // Predicated region
        $region45: #{t5_stack_forward.1} parent=43 // pred_check
          %p283 = pneg %p38
        $region46: #{t5_stack_forward.1} parent=43 // pred_check_branch
          %285 = sbr.rel (%p283) target = $region48
        $region47: #{t5_stack_forward.1} parent=43 // pred_region
          %p286 = scmp.lt.s32.totalorder %s18, 1
          %s287 = scalar_select %p286, %s18, 1
          %s288 = smul.addr %s287, 8
          %s289 = scalar_lea.vmem %s0, %s288
        $region48: #{t5_stack_forward.1} parent=43 // pred_fallthru
          _
        // Predicated region
        $region49: #{t5_stack_forward.1} parent=43 // pred_check
          %p290 = pneg %p64
        $region50: #{t5_stack_forward.1} parent=43 // pred_check_branch
          %292 = sbr.rel (%p290) target = $region52
        $region51: #{t5_stack_forward.1} parent=43 // pred_region
          %p293 = scmp.lt.s32.totalorder %s18, 1
          %s294 = scalar_select %p293, %s18, 1
          %s295 = smul.addr %s294, 4
          %s296 = smul.addr %s295, 8
          %s297 = scalar_lea.vmem %s1, %s296
        $region52: #{t5_stack_forward.1} parent=43 // pred_fallthru
          _
      $region44: #{t5_stack_forward.1} parent=5 // pred_fallthru
        _
      %p298 = scmp.le.s32.totalorder 1, %s18
      %p299 = scmp.lt.s32.totalorder %s18, 3
      %p300 = pnand %p298, %p299
      %p301 = pneg %p300
      // Predicated region
      $region53: #{t5_stack_forward.1} parent=5 // pred_check
        _
      $region54: #{t5_stack_forward.1} parent=5 // pred_check_branch
        %303 = sbr.rel (%p300) target = $region56
      $region55: #{t5_stack_forward.1} parent=5 // pred_region
        %s304 = ssub.s32 %s18, 1
        %p305 = scmp.lt.s32.totalorder %s23, 1
        %s306 = scalar_select %p305, %s23, 1
        %s307 = smul.addr %s306, 8
        %s308 = scalar_lea.vmem %s0, %s307
        %p309 = pneg %p44
        %p310 = pneg %p41
        %p311 = scmp.lt.s32.totalorder %s23, 1
        %s312 = scalar_select %p311, %s23, 1
        %s313 = smul.addr %s312, 4
        %s314 = smul.addr %s313, 8
        %s315 = scalar_lea.vmem %s1, %s314
        %p316 = pneg %p70
        %p317 = pneg %p67
        %p318 = pneg %p91
        %p319 = pneg %p88
        %p320 = pneg %p112
        %p321 = pneg %p109
        %p322 = pneg %p133
        %p323 = pneg %p130
        %p324 = pneg %p154
        %p325 = pneg %p151
        %p326 = pneg %p175
        %p327 = pneg %p172
        %p328 = pneg %p196
        %p329 = pneg %p193
        %p330 = pneg %p217
        %p331 = pneg %p214
        %p332 = pneg %p243
        %p333 = pneg %p240
        %s334 = sand.u32 %s230, 1
        %s335 = scalar_lea.sflag [#allocation3], %s334
        %s336 = sand.u32 %s230, 1
        %s337 = smul.addr %s336, 8
        %s338 = scalar_lea.vmem [#allocation2], %s337
        %p339 = scmp.lt.s32.totalorder %s23, 1
        %s340 = scalar_select %p339, %s23, 1
        %s341 = smul.addr %s340, 8
        %s342 = scalar_lea.vmem %s0, %s341
        %p343 = scmp.lt.s32.totalorder %s23, 1
        %s344 = scalar_select %p343, %s23, 1
        %s345 = smul.addr %s344, 4
        %s346 = smul.addr %s345, 8
        %s347 = scalar_lea.vmem %s1, %s346
        %v349 = vld [vmem:[%s342] sm:$0xff]
        %v350 = vld [vmem:[%s347] sm:$0xff]
        %v351 = vld [vmem:[%s347 + $0x8] sm:$0xff]
        %v352 = vld [vmem:[%s347 + $0x10] sm:$0xff]
        %v353 = vld [vmem:[%s347 + $0x18] sm:$0xff]
        %v354 = vld [vmem:[%s2] sm:$0x1]
        %v355 = vmul.f32 %v349, %v349
        %vm356 = vcmask 261120
        %v357 = vsel %vm356, %v355, 0.0
        %358 = vadd.xlane.f32.xlu0 %v357
        %v359 = vpop.xlane.xlu0 %358
        %v360 = vrcp.pop 32.0
        %v361 = vmul.f32 32.0, %v360
        %v362 = vsub.f32 1.0, %v361
        %v363 = vmul.f32 %v360, %v362
        %v364 = vadd.f32 %v360, %v363
        %vm365 = vweird.f32 %v360
        %v366 = vsel %vm365, %v360, %v364
        %v367 = vmul.f32 %v359, %v366
        %v368 = vadd.f32 %v367, 1e-06
        %v369 = vrsqrt.pop %v368
        %v370 = vmul.f32 %v369, %v368
        %v371 = vmul.f32 %v370, %v369
        %v372 = vmul.f32 0.5, %v371
        %v373 = vsub.f32 1.5, %v372
        %v374 = vmul.f32 %v369, %v373
        %vm375 = vweird.f32 %v368
        %vm376 = vweird.f32 %v369
        %vm377 = vmor %vm375, %vm376
        %v378 = vsel %vm377, %v369, %v374
        %v379 = vmul.f32 %v349, %v378
        %v381 = vperm.slane %v354, 0
        %v383 = vmul.f32 %v379, %v381
        %v384 = vpack.c.bf16 %v383, %v383
        %v385 = vld [vmem:[%s3] sm:$0xf]
        %v386 = vld [vmem:[%s3 + $0x4] sm:$0xf]
        %v387 = vld [vmem:[%s3 + $0x8] sm:$0xf]
        %v388 = vld [vmem:[%s3 + $0xc] sm:$0xf]
        %v393 = vunpack.c.l.b16 %v385
        %v394 = vunpack.c.l.b16 %v386
        %v395 = vunpack.c.l.b16 %v387
        %v396 = vunpack.c.l.b16 %v388
        %v397 = vpack.c.b16 %v394, %v393
        %v398 = vpack.c.b16 %v396, %v395
        %v402 = vsel %vm356, %v384, 0
        %404 = vmatpush.bf16.msra.mxu0 0
        %405 = vmatpush.bf16.msra.mxu0 0
        %406 = vmatpush.bf16.msra.mxu0 0
        %407 = vmatpush.bf16.msra.mxu0 0
        %408 = vmatpush.bf16.msra.mxu0 0
        %409 = vmatpush.bf16.msra.mxu0 0
        %410 = vmatpush.bf16.msra.mxu0 %v398
        %411 = vmatpush.bf16.msra.mxu0 %v397
        %412 = vmatmul.bf16.gmra.mxu0 %v402
        %v413 = vpop.f32.mrf.mxu0
        %v414 = vadd.f32 0.0, %v413
        %v415 = vpop.f32.mrf.mxu0
        %416 = vdwg.mxu0
        %v417 = vpack.c.bf16 %v414, %v414
        %v419 = vunpack.c.l.b16 %v417
        %v420 = vpack.c.b16 %v419, %v419
        %421 = vrot.lane.b32.xlu0 %v420, 96
        %v422 = vpop.permute.xlu0 %421
        %vm423 = vcmask 64512
        %v425 = vsel %vm423, %v417, 0
        %v428 = vsel %vm423, %v422, 0
        %430 = vmatpush.bf16.xpose.msra.mxu0 0
        %431 = vmatpush.bf16.xpose.msra.mxu0 0
        %432 = vmatpush.bf16.xpose.msra.mxu0 0
        %433 = vmatpush.bf16.xpose.msra.mxu0 0
        %434 = vmatpush.bf16.xpose.msra.mxu0 0
        %435 = vmatpush.bf16.xpose.msra.mxu0 0
        %436 = vmatpush.bf16.xpose.msra.mxu0 0
        %437 = vmatpush.bf16.xpose.msra.mxu0 %v428
        %438 = vmatmul.bf16.gmra.mxu0 %v425
        %v439 = vpop.f32.mrf.mxu0
        %v440 = vadd.f32 %v350, %v439
        %v441 = vpop.f32.mrf.mxu0
        %442 = vdwg.mxu0
        %v443 = vsel %vm423, %v440, -inf
        %444 = vmax.xlane.f32.xlu0 %v443
        %v445 = vpop.xlane.xlu0 %444
        %v446 = vsub.f32 %v440, %v445
        %v447 = vmul.f32 %v446, 1.442695
        %v448 = vpow.pop %v447
        %v449 = vsel %vm423, %v448, 0.0
        %450 = vadd.xlane.f32.xlu0 %v449
        %v451 = vpop.xlane.xlu0 %450
        %v452 = vrcp.pop %v451
        %v453 = vmul.f32 %v448, %v452
        %v454 = vpack.c.bf16 %v453, %v453
        %455 = vrot.lane.b32.xlu0 %v420, 64
        %v456 = vpop.permute.xlu0 %455
        %v458 = vsel %vm423, %v454, 0
        %vm460 = vcmask 1043456
        %v462 = vsel %vm460, %v456, 0
        %464 = vmatpush.bf16.msra.mxu0 0
        %465 = vmatpush.bf16.msra.mxu0 0
        %466 = vmatpush.bf16.msra.mxu0 0
        %467 = vmatpush.bf16.msra.mxu0 0
        %468 = vmatpush.bf16.msra.mxu0 0
        %469 = vmatpush.bf16.msra.mxu0 0
        %470 = vmatpush.bf16.msra.mxu0 0
        %471 = vmatpush.bf16.msra.mxu0 %v462
        %472 = vmatmul.bf16.gmra.mxu0 %v458
        %v473 = vpop.f32.mrf.mxu0
        %v474 = vadd.f32 0.0, %v473
        %v475 = vpop.f32.mrf.mxu0
        %476 = vdwg.mxu0
        %477 = vrot.lane.b32.xlu0 %v420, 120
        %v478 = vpop.permute.xlu0 %477
        %479 = vrot.lane.b32.xlu0 %v420, 88
        %v480 = vpop.permute.xlu0 %479
        %v482 = vsel %vm423, %v478, 0
        %v485 = vsel %vm423, %v480, 0
        %487 = vmatpush.bf16.xpose.msra.mxu0 0
        %488 = vmatpush.bf16.xpose.msra.mxu0 0
        %489 = vmatpush.bf16.xpose.msra.mxu0 0
        %490 = vmatpush.bf16.xpose.msra.mxu0 0
        %491 = vmatpush.bf16.xpose.msra.mxu0 0
        %492 = vmatpush.bf16.xpose.msra.mxu0 0
        %493 = vmatpush.bf16.xpose.msra.mxu0 0
        %494 = vmatpush.bf16.xpose.msra.mxu0 %v485
        %495 = vmatmul.bf16.gmra.mxu0 %v482
        %v496 = vpop.f32.mrf.mxu0
        %v497 = vadd.f32 %v351, %v496
        %v498 = vpop.f32.mrf.mxu0
        %499 = vdwg.mxu0
        %v500 = vsel %vm423, %v497, -inf
        %501 = vmax.xlane.f32.xlu0 %v500
        %v502 = vpop.xlane.xlu0 %501
        %v503 = vsub.f32 %v497, %v502
        %v504 = vmul.f32 %v503, 1.442695
        %v505 = vpow.pop %v504
        %v506 = vsel %vm423, %v505, 0.0
        %507 = vadd.xlane.f32.xlu0 %v506
        %v508 = vpop.xlane.xlu0 %507
        %v509 = vrcp.pop %v508
        %v510 = vmul.f32 %v505, %v509
        %v511 = vpack.c.bf16 %v510, %v510
        %512 = vrot.lane.b32.xlu0 %v420, 56
        %v513 = vpop.permute.xlu0 %512
        %v515 = vsel %vm423, %v511, 0
        %v518 = vsel %vm460, %v513, 0
        %520 = vmatpush.bf16.msra.mxu0 0
        %521 = vmatpush.bf16.msra.mxu0 0
        %522 = vmatpush.bf16.msra.mxu0 0
        %523 = vmatpush.bf16.msra.mxu0 0
        %524 = vmatpush.bf16.msra.mxu0 0
        %525 = vmatpush.bf16.msra.mxu0 0
        %526 = vmatpush.bf16.msra.mxu0 0
        %527 = vmatpush.bf16.msra.mxu0 %v518
        %528 = vmatmul.bf16.gmra.mxu0 %v515
        %v529 = vpop.f32.mrf.mxu0
        %v530 = vadd.f32 0.0, %v529
        %v531 = vpop.f32.mrf.mxu0
        %532 = vdwg.mxu0
        %533 = vrot.lane.b32.xlu0 %v420, 112
        %v534 = vpop.permute.xlu0 %533
        %535 = vrot.lane.b32.xlu0 %v420, 80
        %v536 = vpop.permute.xlu0 %535
        %v538 = vsel %vm423, %v534, 0
        %v541 = vsel %vm423, %v536, 0
        %543 = vmatpush.bf16.xpose.msra.mxu0 0
        %544 = vmatpush.bf16.xpose.msra.mxu0 0
        %545 = vmatpush.bf16.xpose.msra.mxu0 0
        %546 = vmatpush.bf16.xpose.msra.mxu0 0
        %547 = vmatpush.bf16.xpose.msra.mxu0 0
        %548 = vmatpush.bf16.xpose.msra.mxu0 0
        %549 = vmatpush.bf16.xpose.msra.mxu0 0
        %550 = vmatpush.bf16.xpose.msra.mxu0 %v541
        %551 = vmatmul.bf16.gmra.mxu0 %v538
        %v552 = vpop.f32.mrf.mxu0
        %v553 = vadd.f32 %v352, %v552
        %v554 = vpop.f32.mrf.mxu0
        %555 = vdwg.mxu0
        %v556 = vsel %vm423, %v553, -inf
        %557 = vmax.xlane.f32.xlu0 %v556
        %v558 = vpop.xlane.xlu0 %557
        %v559 = vsub.f32 %v553, %v558
        %v560 = vmul.f32 %v559, 1.442695
        %v561 = vpow.pop %v560
        %v562 = vsel %vm423, %v561, 0.0
        %563 = vadd.xlane.f32.xlu0 %v562
        %v564 = vpop.xlane.xlu0 %563
        %v565 = vrcp.pop %v564
        %v566 = vmul.f32 %v561, %v565
        %v567 = vpack.c.bf16 %v566, %v566
        %568 = vrot.lane.b32.xlu0 %v420, 48
        %v569 = vpop.permute.xlu0 %568
        %v571 = vsel %vm423, %v567, 0
        %v574 = vsel %vm460, %v569, 0
        %576 = vmatpush.bf16.msra.mxu0 0
        %577 = vmatpush.bf16.msra.mxu0 0
        %578 = vmatpush.bf16.msra.mxu0 0
        %579 = vmatpush.bf16.msra.mxu0 0
        %580 = vmatpush.bf16.msra.mxu0 0
        %581 = vmatpush.bf16.msra.mxu0 0
        %582 = vmatpush.bf16.msra.mxu0 0
        %583 = vmatpush.bf16.msra.mxu0 %v574
        %584 = vmatmul.bf16.gmra.mxu0 %v571
        %v585 = vpop.f32.mrf.mxu0
        %v586 = vadd.f32 0.0, %v585
        %v587 = vpop.f32.mrf.mxu0
        %588 = vdwg.mxu0
        %589 = vrot.lane.b32.xlu0 %v420, 104
        %v590 = vpop.permute.xlu0 %589
        %591 = vrot.lane.b32.xlu0 %v420, 72
        %v592 = vpop.permute.xlu0 %591
        %v594 = vsel %vm423, %v590, 0
        %v597 = vsel %vm423, %v592, 0
        %599 = vmatpush.bf16.xpose.msra.mxu0 0
        %600 = vmatpush.bf16.xpose.msra.mxu0 0
        %601 = vmatpush.bf16.xpose.msra.mxu0 0
        %602 = vmatpush.bf16.xpose.msra.mxu0 0
        %603 = vmatpush.bf16.xpose.msra.mxu0 0
        %604 = vmatpush.bf16.xpose.msra.mxu0 0
        %605 = vmatpush.bf16.xpose.msra.mxu0 0
        %606 = vmatpush.bf16.xpose.msra.mxu0 %v597
        %607 = vmatmul.bf16.gmra.mxu0 %v594
        %v608 = vpop.f32.mrf.mxu0
        %v609 = vadd.f32 %v353, %v608
        %v610 = vpop.f32.mrf.mxu0
        %611 = vdwg.mxu0
        %v612 = vsel %vm423, %v609, -inf
        %613 = vmax.xlane.f32.xlu0 %v612
        %v614 = vpop.xlane.xlu0 %613
        %v615 = vsub.f32 %v609, %v614
        %v616 = vmul.f32 %v615, 1.442695
        %v617 = vpow.pop %v616
        %v618 = vsel %vm423, %v617, 0.0
        %619 = vadd.xlane.f32.xlu0 %v618
        %v620 = vpop.xlane.xlu0 %619
        %v621 = vrcp.pop %v620
        %v622 = vmul.f32 %v617, %v621
        %v623 = vpack.c.bf16 %v622, %v622
        %624 = vrot.lane.b32.xlu0 %v420, 40
        %v625 = vpop.permute.xlu0 %624
        %v627 = vsel %vm423, %v623, 0
        %v630 = vsel %vm460, %v625, 0
        %632 = vmatpush.bf16.msra.mxu0 0
        %633 = vmatpush.bf16.msra.mxu0 0
        %634 = vmatpush.bf16.msra.mxu0 0
        %635 = vmatpush.bf16.msra.mxu0 0
        %636 = vmatpush.bf16.msra.mxu0 0
        %637 = vmatpush.bf16.msra.mxu0 0
        %638 = vmatpush.bf16.msra.mxu0 0
        %639 = vmatpush.bf16.msra.mxu0 %v630
        %640 = vmatmul.bf16.gmra.mxu0 %v627
        %v641 = vpop.f32.mrf.mxu0
        %v642 = vadd.f32 0.0, %v641
        %v643 = vpop.f32.mrf.mxu0
        %644 = vdwg.mxu0
        %646 = vrot.lane.b32.xlu0 %v530, 8
        %v647 = vpop.permute.xlu0 %646
        %650 = vrot.lane.b32.xlu0 %v586, 16
        %v651 = vpop.permute.xlu0 %650
        %654 = vrot.lane.b32.xlu0 %v642, 24
        %v655 = vpop.permute.xlu0 %654
        %v657 = vsel %vm423, %v474, %v647
        %vm658 = vcmask 130048
        %v659 = vsel %vm658, %v657, %v651
        %vm660 = vcmask 195584
        %v661 = vsel %vm660, %v659, %v655
        %v662 = vpack.c.bf16 %v661, %v661
        %v663 = vld [vmem:[%s4] sm:$0xf]
        %v664 = vld [vmem:[%s4 + $0x4] sm:$0xf]
        %v665 = vld [vmem:[%s4 + $0x8] sm:$0xf]
        %v666 = vld [vmem:[%s4 + $0xc] sm:$0xf]
        %v671 = vunpack.c.l.b16 %v663
        %v672 = vunpack.c.l.b16 %v664
        %v673 = vunpack.c.l.b16 %v665
        %v674 = vunpack.c.l.b16 %v666
        %v675 = vpack.c.b16 %v672, %v671
        %v676 = vpack.c.b16 %v674, %v673
        %v680 = vsel %vm356, %v662, 0
        %682 = vmatpush.bf16.msra.mxu0 0
        %683 = vmatpush.bf16.msra.mxu0 0
        %684 = vmatpush.bf16.msra.mxu0 0
        %685 = vmatpush.bf16.msra.mxu0 0
        %686 = vmatpush.bf16.msra.mxu0 0
        %687 = vmatpush.bf16.msra.mxu0 0
        %688 = vmatpush.bf16.msra.mxu0 %v676
        %689 = vmatpush.bf16.msra.mxu0 %v675
        %690 = vmatmul.bf16.gmra.mxu0 %v680
        %v691 = vpop.f32.mrf.mxu0
        %v692 = vadd.f32 0.0, %v691
        %v693 = vpop.f32.mrf.mxu0
        %694 = vdwg.mxu0
        %v695 = vadd.f32 %v349, %v692
        %v696 = vld [vmem:[%s5] sm:$0x1]
        %v697 = vmul.f32 %v695, %v695
        %v698 = vsel %vm356, %v697, 0.0
        %699 = vadd.xlane.f32.xlu0 %v698
        %v700 = vpop.xlane.xlu0 %699
        %v701 = vmul.f32 %v700, %v366
        %v702 = vadd.f32 %v701, 1e-06
        %v703 = vrsqrt.pop %v702
        %v704 = vmul.f32 %v703, %v702
        %v705 = vmul.f32 %v704, %v703
        %v706 = vmul.f32 0.5, %v705
        %v707 = vsub.f32 1.5, %v706
        %v708 = vmul.f32 %v703, %v707
        %vm709 = vweird.f32 %v702
        %vm710 = vweird.f32 %v703
        %vm711 = vmor %vm709, %vm710
        %v712 = vsel %vm711, %v703, %v708
        %v713 = vmul.f32 %v695, %v712
        %v715 = vperm.slane %v696, 0
        %v717 = vmul.f32 %v713, %v715
        %v718 = vpack.c.bf16 %v717, %v717
        %v719 = vld [vmem:[%s6] sm:$0xf]
        %v720 = vld [vmem:[%s6 + $0x4] sm:$0xf]
        %v721 = vld [vmem:[%s6 + $0x8] sm:$0xf]
        %v722 = vld [vmem:[%s6 + $0xc] sm:$0xf]
        %v727 = vunpack.c.l.b16 %v719
        %v728 = vunpack.c.l.b16 %v720
        %v729 = vunpack.c.l.b16 %v721
        %v730 = vunpack.c.l.b16 %v722
        %v731 = vpack.c.b16 %v728, %v727
        %v732 = vpack.c.b16 %v730, %v729
        %v736 = vsel %vm356, %v718, 0
        %738 = vmatpush.bf16.msra.mxu0 0
        %739 = vmatpush.bf16.msra.mxu0 0
        %740 = vmatpush.bf16.msra.mxu0 0
        %741 = vmatpush.bf16.msra.mxu0 0
        %742 = vmatpush.bf16.msra.mxu0 0
        %743 = vmatpush.bf16.msra.mxu0 0
        %744 = vmatpush.bf16.msra.mxu0 %v732
        %745 = vmatpush.bf16.msra.mxu0 %v731
        %746 = vmatmul.bf16.gmra.mxu0 %v736
        %v747 = vpop.f32.mrf.mxu0
        %v748 = vadd.f32 0.0, %v747
        %v749 = vpop.f32.mrf.mxu0
        %750 = vdwg.mxu0
        %v751 = vmul.f32 %v748, 0.5
        %v752 = vmul.f32 %v748, 0.7978846
        %v753 = vmul.f32 %v748, 0.044715
        %v754 = vmul.f32 %v753, %v748
        %v755 = vadd.f32 %v754, 1.0
        %v756 = vmul.f32 %v752, %v755
        %v757 = vtanh.pop %v756
        %v758 = vadd.f32 %v757, 1.0
        %v759 = vmul.f32 %v751, %v758
        %761 = vrot.lane.b32.xlu0 %v748, 64
        %v762 = vpop.permute.xlu0 %761
        %v764 = vmul.f32 %v759, %v762
        %v765 = vpack.c.bf16 %v764, %v764
        %v766 = vld [vmem:[%s7] sm:$0xf]
        %v767 = vld [vmem:[%s7 + $0x4] sm:$0xf]
        %v768 = vld [vmem:[%s7 + $0x8] sm:$0xf]
        %v769 = vld [vmem:[%s7 + $0xc] sm:$0xf]
        %v770 = vld [vmem:[%s7 + $0x10] sm:$0xf]
        %v771 = vld [vmem:[%s7 + $0x14] sm:$0xf]
        %v772 = vld [vmem:[%s7 + $0x18] sm:$0xf]
        %v773 = vld [vmem:[%s7 + $0x1c] sm:$0xf]
        %v782 = vunpack.c.l.b16 %v766
        %v783 = vunpack.c.l.b16 %v767
        %v784 = vunpack.c.l.b16 %v768
        %v785 = vunpack.c.l.b16 %v769
        %v786 = vunpack.c.l.b16 %v770
        %v787 = vunpack.c.l.b16 %v771
        %v788 = vunpack.c.l.b16 %v772
        %v789 = vunpack.c.l.b16 %v773
        %v790 = vpack.c.b16 %v783, %v782
        %v791 = vpack.c.b16 %v785, %v784
        %v792 = vpack.c.b16 %v787, %v786
        %v793 = vpack.c.b16 %v789, %v788
        %vm798 = vcmask 523264
        %v800 = vsel %vm798, %v765, 0
        %802 = vmatpush.bf16.msra.mxu0 0
        %803 = vmatpush.bf16.msra.mxu0 0
        %804 = vmatpush.bf16.msra.mxu0 0
        %805 = vmatpush.bf16.msra.mxu0 0
        %806 = vmatpush.bf16.msra.mxu0 %v793
        %807 = vmatpush.bf16.msra.mxu0 %v792
        %808 = vmatpush.bf16.msra.mxu0 %v791
        %809 = vmatpush.bf16.msra.mxu0 %v790
        %810 = vmatmul.bf16.gmra.mxu0 %v800
        %v811 = vpop.f32.mrf.mxu0
        %v812 = vadd.f32 0.0, %v811
        %v813 = vpop.f32.mrf.mxu0
        %814 = vdwg.mxu0
        %v815 = vadd.f32 %v695, %v812
        %s816 = scalar_lea.vmem %s2, 1
        %v817 = vld [vmem:[%s816] sm:$0x1]
        %v818 = vmul.f32 %v815, %v815
        %v819 = vsel %vm356, %v818, 0.0
        %820 = vadd.xlane.f32.xlu0 %v819
        %v821 = vpop.xlane.xlu0 %820
        %v822 = vmul.f32 %v821, %v366
        %v823 = vadd.f32 %v822, 1e-06
        %v824 = vrsqrt.pop %v823
        %v825 = vmul.f32 %v824, %v823
        %v826 = vmul.f32 %v825, %v824
        %v827 = vmul.f32 0.5, %v826
        %v828 = vsub.f32 1.5, %v827
        %v829 = vmul.f32 %v824, %v828
        %vm830 = vweird.f32 %v823
        %vm831 = vweird.f32 %v824
        %vm832 = vmor %vm830, %vm831
        %v833 = vsel %vm832, %v824, %v829
        %v834 = vmul.f32 %v815, %v833
        %v836 = vperm.slane %v817, 0
        %v838 = vmul.f32 %v834, %v836
        %v839 = vpack.c.bf16 %v838, %v838
        %s840 = scalar_lea.vmem %s3, 16
        %v841 = vld [vmem:[%s840] sm:$0xf]
        %v842 = vld [vmem:[%s840 + $0x4] sm:$0xf]
        %v843 = vld [vmem:[%s840 + $0x8] sm:$0xf]
        %v844 = vld [vmem:[%s840 + $0xc] sm:$0xf]
        %v849 = vunpack.c.l.b16 %v841
        %v850 = vunpack.c.l.b16 %v842
        %v851 = vunpack.c.l.b16 %v843
        %v852 = vunpack.c.l.b16 %v844
        %v853 = vpack.c.b16 %v850, %v849
        %v854 = vpack.c.b16 %v852, %v851
        %v858 = vsel %vm356, %v839, 0
        %860 = vmatpush.bf16.msra.mxu0 0
        %861 = vmatpush.bf16.msra.mxu0 0
        %862 = vmatpush.bf16.msra.mxu0 0
        %863 = vmatpush.bf16.msra.mxu0 0
        %864 = vmatpush.bf16.msra.mxu0 0
        %865 = vmatpush.bf16.msra.mxu0 0
        %866 = vmatpush.bf16.msra.mxu0 %v854
        %867 = vmatpush.bf16.msra.mxu0 %v853
        %868 = vmatmul.bf16.gmra.mxu0 %v858
        %v869 = vpop.f32.mrf.mxu0
        %v870 = vadd.f32 0.0, %v869
        %v871 = vpop.f32.mrf.mxu0
        %872 = vdwg.mxu0
        %v873 = vpack.c.bf16 %v870, %v870
        %v875 = vunpack.c.l.b16 %v873
        %v876 = vpack.c.b16 %v875, %v875
        %877 = vrot.lane.b32.xlu0 %v876, 96
        %v878 = vpop.permute.xlu0 %877
        %v880 = vsel %vm423, %v873, 0
        %v883 = vsel %vm423, %v878, 0
        %885 = vmatpush.bf16.xpose.msra.mxu0 0
        %886 = vmatpush.bf16.xpose.msra.mxu0 0
        %887 = vmatpush.bf16.xpose.msra.mxu0 0
        %888 = vmatpush.bf16.xpose.msra.mxu0 0
        %889 = vmatpush.bf16.xpose.msra.mxu0 0
        %890 = vmatpush.bf16.xpose.msra.mxu0 0
        %891 = vmatpush.bf16.xpose.msra.mxu0 0
        %892 = vmatpush.bf16.xpose.msra.mxu0 %v883
        %893 = vmatmul.bf16.gmra.mxu0 %v880
        %v894 = vpop.f32.mrf.mxu0
        %v895 = vadd.f32 %v350, %v894
        %v896 = vpop.f32.mrf.mxu0
        %897 = vdwg.mxu0
        %v898 = vsel %vm423, %v895, -inf
        %899 = vmax.xlane.f32.xlu0 %v898
        %v900 = vpop.xlane.xlu0 %899
        %v901 = vsub.f32 %v895, %v900
        %v902 = vmul.f32 %v901, 1.442695
        %v903 = vpow.pop %v902
        %v904 = vsel %vm423, %v903, 0.0
        %905 = vadd.xlane.f32.xlu0 %v904
        %v906 = vpop.xlane.xlu0 %905
        %v907 = vrcp.pop %v906
        %v908 = vmul.f32 %v903, %v907
        %v909 = vpack.c.bf16 %v908, %v908
        %910 = vrot.lane.b32.xlu0 %v876, 64
        %v911 = vpop.permute.xlu0 %910
        %v913 = vsel %vm423, %v909, 0
        %v916 = vsel %vm460, %v911, 0
        %918 = vmatpush.bf16.msra.mxu0 0
        %919 = vmatpush.bf16.msra.mxu0 0
        %920 = vmatpush.bf16.msra.mxu0 0
        %921 = vmatpush.bf16.msra.mxu0 0
        %922 = vmatpush.bf16.msra.mxu0 0
        %923 = vmatpush.bf16.msra.mxu0 0
        %924 = vmatpush.bf16.msra.mxu0 0
        %925 = vmatpush.bf16.msra.mxu0 %v916
        %926 = vmatmul.bf16.gmra.mxu0 %v913
        %v927 = vpop.f32.mrf.mxu0
        %v928 = vadd.f32 0.0, %v927
        %v929 = vpop.f32.mrf.mxu0
        %930 = vdwg.mxu0
        %931 = vrot.lane.b32.xlu0 %v876, 120
        %v932 = vpop.permute.xlu0 %931
        %933 = vrot.lane.b32.xlu0 %v876, 88
        %v934 = vpop.permute.xlu0 %933
        %v936 = vsel %vm423, %v932, 0
        %v939 = vsel %vm423, %v934, 0
        %941 = vmatpush.bf16.xpose.msra.mxu0 0
        %942 = vmatpush.bf16.xpose.msra.mxu0 0
        %943 = vmatpush.bf16.xpose.msra.mxu0 0
        %944 = vmatpush.bf16.xpose.msra.mxu0 0
        %945 = vmatpush.bf16.xpose.msra.mxu0 0
        %946 = vmatpush.bf16.xpose.msra.mxu0 0
        %947 = vmatpush.bf16.xpose.msra.mxu0 0
        %948 = vmatpush.bf16.xpose.msra.mxu0 %v939
        %949 = vmatmul.bf16.gmra.mxu0 %v936
        %v950 = vpop.f32.mrf.mxu0
        %v951 = vadd.f32 %v351, %v950
        %v952 = vpop.f32.mrf.mxu0
        %953 = vdwg.mxu0
        %v954 = vsel %vm423, %v951, -inf
        %955 = vmax.xlane.f32.xlu0 %v954
        %v956 = vpop.xlane.xlu0 %955
        %v957 = vsub.f32 %v951, %v956
        %v958 = vmul.f32 %v957, 1.442695
        %v959 = vpow.pop %v958
        %v960 = vsel %vm423, %v959, 0.0
        %961 = vadd.xlane.f32.xlu0 %v960
        %v962 = vpop.xlane.xlu0 %961
        %v963 = vrcp.pop %v962
        %v964 = vmul.f32 %v959, %v963
        %v965 = vpack.c.bf16 %v964, %v964
        %966 = vrot.lane.b32.xlu0 %v876, 56
        %v967 = vpop.permute.xlu0 %966
        %v969 = vsel %vm423, %v965, 0
        %v972 = vsel %vm460, %v967, 0
        %974 = vmatpush.bf16.msra.mxu0 0
        %975 = vmatpush.bf16.msra.mxu0 0
        %976 = vmatpush.bf16.msra.mxu0 0
        %977 = vmatpush.bf16.msra.mxu0 0
        %978 = vmatpush.bf16.msra.mxu0 0
        %979 = vmatpush.bf16.msra.mxu0 0
        %980 = vmatpush.bf16.msra.mxu0 0
        %981 = vmatpush.bf16.msra.mxu0 %v972
        %982 = vmatmul.bf16.gmra.mxu0 %v969
        %v983 = vpop.f32.mrf.mxu0
        %v984 = vadd.f32 0.0, %v983
        %v985 = vpop.f32.mrf.mxu0
        %986 = vdwg.mxu0
        %987 = vrot.lane.b32.xlu0 %v876, 112
        %v988 = vpop.permute.xlu0 %987
        %989 = vrot.lane.b32.xlu0 %v876, 80
        %v990 = vpop.permute.xlu0 %989
        %v992 = vsel %vm423, %v988, 0
        %v995 = vsel %vm423, %v990, 0
        %997 = vmatpush.bf16.xpose.msra.mxu0 0
        %998 = vmatpush.bf16.xpose.msra.mxu0 0
        %999 = vmatpush.bf16.xpose.msra.mxu0 0
        %1000 = vmatpush.bf16.xpose.msra.mxu0 0
        %1001 = vmatpush.bf16.xpose.msra.mxu0 0
        %1002 = vmatpush.bf16.xpose.msra.mxu0 0
        %1003 = vmatpush.bf16.xpose.msra.mxu0 0
        %1004 = vmatpush.bf16.xpose.msra.mxu0 %v995
        %1005 = vmatmul.bf16.gmra.mxu0 %v992
        %v1006 = vpop.f32.mrf.mxu0
        %v1007 = vadd.f32 %v352, %v1006
        %v1008 = vpop.f32.mrf.mxu0
        %1009 = vdwg.mxu0
        %v1010 = vsel %vm423, %v1007, -inf
        %1011 = vmax.xlane.f32.xlu0 %v1010
        %v1012 = vpop.xlane.xlu0 %1011
        %v1013 = vsub.f32 %v1007, %v1012
        %v1014 = vmul.f32 %v1013, 1.442695
        %v1015 = vpow.pop %v1014
        %v1016 = vsel %vm423, %v1015, 0.0
        %1017 = vadd.xlane.f32.xlu0 %v1016
        %v1018 = vpop.xlane.xlu0 %1017
        %v1019 = vrcp.pop %v1018
        %v1020 = vmul.f32 %v1015, %v1019
        %v1021 = vpack.c.bf16 %v1020, %v1020
        %1022 = vrot.lane.b32.xlu0 %v876, 48
        %v1023 = vpop.permute.xlu0 %1022
        %v1025 = vsel %vm423, %v1021, 0
        %v1028 = vsel %vm460, %v1023, 0
        %1030 = vmatpush.bf16.msra.mxu0 0
        %1031 = vmatpush.bf16.msra.mxu0 0
        %1032 = vmatpush.bf16.msra.mxu0 0
        %1033 = vmatpush.bf16.msra.mxu0 0
        %1034 = vmatpush.bf16.msra.mxu0 0
        %1035 = vmatpush.bf16.msra.mxu0 0
        %1036 = vmatpush.bf16.msra.mxu0 0
        %1037 = vmatpush.bf16.msra.mxu0 %v1028
        %1038 = vmatmul.bf16.gmra.mxu0 %v1025
        %v1039 = vpop.f32.mrf.mxu0
        %v1040 = vadd.f32 0.0, %v1039
        %v1041 = vpop.f32.mrf.mxu0
        %1042 = vdwg.mxu0
        %1043 = vrot.lane.b32.xlu0 %v876, 104
        %v1044 = vpop.permute.xlu0 %1043
        %1045 = vrot.lane.b32.xlu0 %v876, 72
        %v1046 = vpop.permute.xlu0 %1045
        %v1048 = vsel %vm423, %v1044, 0
        %v1051 = vsel %vm423, %v1046, 0
        %1053 = vmatpush.bf16.xpose.msra.mxu0 0
        %1054 = vmatpush.bf16.xpose.msra.mxu0 0
        %1055 = vmatpush.bf16.xpose.msra.mxu0 0
        %1056 = vmatpush.bf16.xpose.msra.mxu0 0
        %1057 = vmatpush.bf16.xpose.msra.mxu0 0
        %1058 = vmatpush.bf16.xpose.msra.mxu0 0
        %1059 = vmatpush.bf16.xpose.msra.mxu0 0
        %1060 = vmatpush.bf16.xpose.msra.mxu0 %v1051
        %1061 = vmatmul.bf16.gmra.mxu0 %v1048
        %v1062 = vpop.f32.mrf.mxu0
        %v1063 = vadd.f32 %v353, %v1062
        %v1064 = vpop.f32.mrf.mxu0
        %1065 = vdwg.mxu0
        %v1066 = vsel %vm423, %v1063, -inf
        %1067 = vmax.xlane.f32.xlu0 %v1066
        %v1068 = vpop.xlane.xlu0 %1067
        %v1069 = vsub.f32 %v1063, %v1068
        %v1070 = vmul.f32 %v1069, 1.442695
        %v1071 = vpow.pop %v1070
        %v1072 = vsel %vm423, %v1071, 0.0
        %1073 = vadd.xlane.f32.xlu0 %v1072
        %v1074 = vpop.xlane.xlu0 %1073
        %v1075 = vrcp.pop %v1074
        %v1076 = vmul.f32 %v1071, %v1075
        %v1077 = vpack.c.bf16 %v1076, %v1076
        %1078 = vrot.lane.b32.xlu0 %v876, 40
        %v1079 = vpop.permute.xlu0 %1078
        %v1081 = vsel %vm423, %v1077, 0
        %v1084 = vsel %vm460, %v1079, 0
        %1086 = vmatpush.bf16.msra.mxu0 0
        %1087 = vmatpush.bf16.msra.mxu0 0
        %1088 = vmatpush.bf16.msra.mxu0 0
        %1089 = vmatpush.bf16.msra.mxu0 0
        %1090 = vmatpush.bf16.msra.mxu0 0
        %1091 = vmatpush.bf16.msra.mxu0 0
        %1092 = vmatpush.bf16.msra.mxu0 0
        %1093 = vmatpush.bf16.msra.mxu0 %v1084
        %1094 = vmatmul.bf16.gmra.mxu0 %v1081
        %v1095 = vpop.f32.mrf.mxu0
        %v1096 = vadd.f32 0.0, %v1095
        %v1097 = vpop.f32.mrf.mxu0
        %1098 = vdwg.mxu0
        %1100 = vrot.lane.b32.xlu0 %v984, 8
        %v1101 = vpop.permute.xlu0 %1100
        %1104 = vrot.lane.b32.xlu0 %v1040, 16
        %v1105 = vpop.permute.xlu0 %1104
        %1108 = vrot.lane.b32.xlu0 %v1096, 24
        %v1109 = vpop.permute.xlu0 %1108
        %v1111 = vsel %vm423, %v928, %v1101
        %v1112 = vsel %vm658, %v1111, %v1105
        %v1113 = vsel %vm660, %v1112, %v1109
        %v1114 = vpack.c.bf16 %v1113, %v1113
        %s1115 = scalar_lea.vmem %s4, 16
        %v1116 = vld [vmem:[%s1115] sm:$0xf]
        %v1117 = vld [vmem:[%s1115 + $0x4] sm:$0xf]
        %v1118 = vld [vmem:[%s1115 + $0x8] sm:$0xf]
        %v1119 = vld [vmem:[%s1115 + $0xc] sm:$0xf]
        %v1124 = vunpack.c.l.b16 %v1116
        %v1125 = vunpack.c.l.b16 %v1117
        %v1126 = vunpack.c.l.b16 %v1118
        %v1127 = vunpack.c.l.b16 %v1119
        %v1128 = vpack.c.b16 %v1125, %v1124
        %v1129 = vpack.c.b16 %v1127, %v1126
        %v1133 = vsel %vm356, %v1114, 0
        %1135 = vmatpush.bf16.msra.mxu0 0
        %1136 = vmatpush.bf16.msra.mxu0 0
        %1137 = vmatpush.bf16.msra.mxu0 0
        %1138 = vmatpush.bf16.msra.mxu0 0
        %1139 = vmatpush.bf16.msra.mxu0 0
        %1140 = vmatpush.bf16.msra.mxu0 0
        %1141 = vmatpush.bf16.msra.mxu0 %v1129
        %1142 = vmatpush.bf16.msra.mxu0 %v1128
        %1143 = vmatmul.bf16.gmra.mxu0 %v1133
        %v1144 = vpop.f32.mrf.mxu0
        %v1145 = vadd.f32 0.0, %v1144
        %v1146 = vpop.f32.mrf.mxu0
        %1147 = vdwg.mxu0
        %v1148 = vadd.f32 %v815, %v1145
        %s1149 = scalar_lea.vmem %s5, 1
        %v1150 = vld [vmem:[%s1149] sm:$0x1]
        %v1151 = vmul.f32 %v1148, %v1148
        %v1152 = vsel %vm356, %v1151, 0.0
        %1153 = vadd.xlane.f32.xlu0 %v1152
        %v1154 = vpop.xlane.xlu0 %1153
        %v1155 = vmul.f32 %v1154, %v366
        %v1156 = vadd.f32 %v1155, 1e-06
        %v1157 = vrsqrt.pop %v1156
        %v1158 = vmul.f32 %v1157, %v1156
        %v1159 = vmul.f32 %v1158, %v1157
        %v1160 = vmul.f32 0.5, %v1159
        %v1161 = vsub.f32 1.5, %v1160
        %v1162 = vmul.f32 %v1157, %v1161
        %vm1163 = vweird.f32 %v1156
        %vm1164 = vweird.f32 %v1157
        %vm1165 = vmor %vm1163, %vm1164
        %v1166 = vsel %vm1165, %v1157, %v1162
        %v1167 = vmul.f32 %v1148, %v1166
        %v1169 = vperm.slane %v1150, 0
        %v1171 = vmul.f32 %v1167, %v1169
        %v1172 = vpack.c.bf16 %v1171, %v1171
        %s1173 = scalar_lea.vmem %s6, 16
        %v1174 = vld [vmem:[%s1173] sm:$0xf]
        %v1175 = vld [vmem:[%s1173 + $0x4] sm:$0xf]
        %v1176 = vld [vmem:[%s1173 + $0x8] sm:$0xf]
        %v1177 = vld [vmem:[%s1173 + $0xc] sm:$0xf]
        %v1182 = vunpack.c.l.b16 %v1174
        %v1183 = vunpack.c.l.b16 %v1175
        %v1184 = vunpack.c.l.b16 %v1176
        %v1185 = vunpack.c.l.b16 %v1177
        %v1186 = vpack.c.b16 %v1183, %v1182
        %v1187 = vpack.c.b16 %v1185, %v1184
        %v1191 = vsel %vm356, %v1172, 0
        %1193 = vmatpush.bf16.msra.mxu0 0
        %1194 = vmatpush.bf16.msra.mxu0 0
        %1195 = vmatpush.bf16.msra.mxu0 0
        %1196 = vmatpush.bf16.msra.mxu0 0
        %1197 = vmatpush.bf16.msra.mxu0 0
        %1198 = vmatpush.bf16.msra.mxu0 0
        %1199 = vmatpush.bf16.msra.mxu0 %v1187
        %1200 = vmatpush.bf16.msra.mxu0 %v1186
        %1201 = vmatmul.bf16.gmra.mxu0 %v1191
        %v1202 = vpop.f32.mrf.mxu0
        %v1203 = vadd.f32 0.0, %v1202
        %v1204 = vpop.f32.mrf.mxu0
        %1205 = vdwg.mxu0
        %v1206 = vmul.f32 %v1203, 0.5
        %v1207 = vmul.f32 %v1203, 0.7978846
        %v1208 = vmul.f32 %v1203, 0.044715
        %v1209 = vmul.f32 %v1208, %v1203
        %v1210 = vadd.f32 %v1209, 1.0
        %v1211 = vmul.f32 %v1207, %v1210
        %v1212 = vtanh.pop %v1211
        %v1213 = vadd.f32 %v1212, 1.0
        %v1214 = vmul.f32 %v1206, %v1213
        %1216 = vrot.lane.b32.xlu0 %v1203, 64
        %v1217 = vpop.permute.xlu0 %1216
        %v1219 = vmul.f32 %v1214, %v1217
        %v1220 = vpack.c.bf16 %v1219, %v1219
        %s1221 = scalar_lea.vmem %s7, 32
        %v1222 = vld [vmem:[%s1221] sm:$0xf]
        %v1223 = vld [vmem:[%s1221 + $0x4] sm:$0xf]
        %v1224 = vld [vmem:[%s1221 + $0x8] sm:$0xf]
        %v1225 = vld [vmem:[%s1221 + $0xc] sm:$0xf]
        %v1226 = vld [vmem:[%s1221 + $0x10] sm:$0xf]
        %v1227 = vld [vmem:[%s1221 + $0x14] sm:$0xf]
        %v1228 = vld [vmem:[%s1221 + $0x18] sm:$0xf]
        %v1229 = vld [vmem:[%s1221 + $0x1c] sm:$0xf]
        %v1238 = vunpack.c.l.b16 %v1222
        %v1239 = vunpack.c.l.b16 %v1223
        %v1240 = vunpack.c.l.b16 %v1224
        %v1241 = vunpack.c.l.b16 %v1225
        %v1242 = vunpack.c.l.b16 %v1226
        %v1243 = vunpack.c.l.b16 %v1227
        %v1244 = vunpack.c.l.b16 %v1228
        %v1245 = vunpack.c.l.b16 %v1229
        %v1246 = vpack.c.b16 %v1239, %v1238
        %v1247 = vpack.c.b16 %v1241, %v1240
        %v1248 = vpack.c.b16 %v1243, %v1242
        %v1249 = vpack.c.b16 %v1245, %v1244
        %v1255 = vsel %vm798, %v1220, 0
        %1257 = vmatpush.bf16.msra.mxu0 0
        %1258 = vmatpush.bf16.msra.mxu0 0
        %1259 = vmatpush.bf16.msra.mxu0 0
        %1260 = vmatpush.bf16.msra.mxu0 0
        %1261 = vmatpush.bf16.msra.mxu0 %v1249
        %1262 = vmatpush.bf16.msra.mxu0 %v1248
        %1263 = vmatpush.bf16.msra.mxu0 %v1247
        %1264 = vmatpush.bf16.msra.mxu0 %v1246
        %1265 = vmatmul.bf16.gmra.mxu0 %v1255
        %v1266 = vpop.f32.mrf.mxu0
        %v1267 = vadd.f32 0.0, %v1266
        %v1268 = vpop.f32.mrf.mxu0
        %1269 = vdwg.mxu0
        %v1270 = vadd.f32 %v1148, %v1267
        %v1271 = vld [vmem:[%s8] sm:$0x1]
        %v1272 = vmul.f32 %v1270, %v1270
        %v1273 = vsel %vm356, %v1272, 0.0
        %1274 = vadd.xlane.f32.xlu0 %v1273
        %v1275 = vpop.xlane.xlu0 %1274
        %v1276 = vmul.f32 %v1275, %v366
        %v1277 = vadd.f32 %v1276, 1e-06
        %v1278 = vrsqrt.pop %v1277
        %v1279 = vmul.f32 %v1278, %v1277
        %v1280 = vmul.f32 %v1279, %v1278
        %v1281 = vmul.f32 0.5, %v1280
        %v1282 = vsub.f32 1.5, %v1281
        %v1283 = vmul.f32 %v1278, %v1282
        %vm1284 = vweird.f32 %v1277
        %vm1285 = vweird.f32 %v1278
        %vm1286 = vmor %vm1284, %vm1285
        %v1287 = vsel %vm1286, %v1278, %v1283
        %v1288 = vmul.f32 %v1270, %v1287
        %v1290 = vperm.slane %v1271, 0
        %v1292 = vmul.f32 %v1288, %v1290
        %1293 = vst.msk [vmem:[%s338] sm:$0xff] %vm356, %v1292
        %s1294 = sand.u32 %s230, 1
        %s1295 = scalar_lea.sflag [#allocation3], %s1294
        %s1296 = sand.u32 %s230, 1
        %s1297 = smul.addr %s1296, 8
        %s1298 = scalar_lea.vmem [#allocation2], %s1297
        // Predicated region
        $region57: #{t5_stack_forward.1} parent=55 // pred_check
          %p1299 = pneg %p240
        $region58: #{t5_stack_forward.1} parent=55 // pred_check_branch
          %1301 = sbr.rel (%p1299) target = $region60
        $region59: #{t5_stack_forward.1} parent=55 // pred_region
          %1303 = vsyncadd %s1295, 0
          %s1304 = smul.addr %s23, 8
          %s1305 = scalar_lea.hbm %s9, %s1304
          %s1307 = sshll.u32 %s1298, 4
          %s1308 = int_to_ptr.vmem [resolvable:$true] %s1307
          %s1309 = sshll.u32 %s1305, 4
          %s1310 = int_to_ptr.hbm [resolvable:$true] %s1309
          %1312 = dma.vmem_to_hbm [thread:$0]  %s1308, 128, %s1310, %s1295
        $region60: #{t5_stack_forward.1} parent=55 // pred_fallthru
          _
      $region56: #{t5_stack_forward.1} parent=5 // pred_fallthru
        _
      %p1313 = scmp.le.s32.totalorder 2, %s18
      // Predicated region
      $region61: #{t5_stack_forward.1} parent=5 // pred_check
        %p1314 = pneg %p1313
      $region62: #{t5_stack_forward.1} parent=5 // pred_check_branch
        %1316 = sbr.rel (%p1314) target = $region64
      $region63: #{t5_stack_forward.1} parent=5 // pred_region
        %s1317 = ssub.s32 %s18, 2
        // Predicated region
        $region65: #{t5_stack_forward.1} parent=63 // pred_check
          %p1318 = pneg %p246
        $region66: #{t5_stack_forward.1} parent=63 // pred_check_branch
          %1320 = sbr.rel (%p1318) target = $region68
        $region67: #{t5_stack_forward.1} parent=63 // pred_region
          %s1321 = sand.u32 %s231, 1
          %s1322 = scalar_lea.sflag [#allocation3], %s1321
          %s1323 = sand.u32 %s231, 1
          %s1324 = smul.addr %s1323, 8
          %s1325 = scalar_lea.vmem [#allocation2], %s1324
          %1327 = dma.done %s1322, 128
        $region68: #{t5_stack_forward.1} parent=63 // pred_fallthru
          _
      $region64: #{t5_stack_forward.1} parent=5 // pred_fallthru
        _
    $region6: #{t5_stack_forward.1} parent=1 // loop_footer
      %s22 = sadd.s32 1, %s18
    $region7: #{t5_stack_forward.1} parent=1 // loop_footer_branch
      %17 = sbr.rel target = $region3
    $region8: #{t5_stack_forward.1} parent=1 // loop_exit
      _
    %1328 = vsyncpa [#allocation3], 1
    %s1329 = scalar_lea.sflag [#allocation3], 1
    %1330 = vsyncpa %s1329, 1

</llo_original>
